<compile_context>
chip_gen: v7x
topology: tpu7x:2x2x1
jax: 0.10.0
libtpu: 0.0.40
codegen_flags: <defaults>
</compile_context>

<pallas_src>
import jax
import jax.numpy as jnp
from jax import lax
from jax.experimental import pallas as pl
from jax.experimental.pallas import tpu as pltpu


BN_EPS = 1e-5


def _round_up(n, m=128):
    return ((n + m - 1) // m) * m


def _pad_to(a, shape):
    pads = [(0, s - d) for d, s in zip(a.shape, shape)]
    return jnp.pad(a, pads)


def _vmem_cap_bytes():
    # 64 MiB per TensorCore on v7x, 128 MiB on v5e/v6e.
    try:
        return int(pltpu.get_tpu_info().vmem_capacity_bytes)
    except Exception:
        return 64 << 20  # conservative fallback


def decoder_kernel(z_ref, w1_ref, v1_ref, w2_hbm, v2_ref, w3_hbm, b3_ref,
                   out_ref, w2_buf, w3_buf, sem):
    # Kick off the big weight transfers immediately so they overlap the
    # fc1 / BN1 (and fc2 / BN2) compute below.
    cp2 = pltpu.make_async_copy(w2_hbm, w2_buf, sem.at[0])
    cp3 = pltpu.make_async_copy(w3_hbm, w3_buf, sem.at[1])
    cp2.start()
    cp3.start()

    inv_b = 1.0 / z_ref.shape[0]  # static batch size -> compile-time constant

    def bn_relu(h, vec_ref):
        # vec_ref rows: [0]=gamma, [1]=beta  (f32, zero lane-padding keeps
        # padded feature columns exactly 0 through BN/ReLU).
        # Training-mode BN: batch mean, biased centered variance.
        mean = jnp.sum(h, axis=0, keepdims=True) * inv_b
        d = h - mean
        var = jnp.sum(d * d, axis=0, keepdims=True) * inv_b
        return jnp.maximum(
            d * lax.rsqrt(var + BN_EPS) * vec_ref[0:1, :] + vec_ref[1:2, :],
            0.0)

    # fc1 -> bn1 -> relu   (bf16 MXU operands, f32 accumulation / BN math).
    # fc1 bias omitted on purpose: cancelled exactly by the BN mean subtract.
    h = jnp.dot(z_ref[...], w1_ref[...], preferred_element_type=jnp.float32)
    h = bn_relu(h, v1_ref)

    # fc2 -> bn2 -> relu (wait for w2 only now; its DMA overlapped fc1/BN1)
    cp2.wait()
    h = jnp.dot(h.astype(jnp.bfloat16), w2_buf[...],
                preferred_element_type=jnp.float32)
    h = bn_relu(h, v2_ref)

    # fc3 (lane-dense output slab); w3 DMA overlapped everything above.
    cp3.wait()
    out = jnp.dot(h.astype(jnp.bfloat16), w3_buf[...],
                  preferred_element_type=jnp.float32)
    out_ref[...] = out + b3_ref[...]


def prepare_params(params):
    """One-time padding / casting / packing of parameters (cache the result).

    Weights are stored as (in, out); feature dims are zero-padded to 128
    multiples and cast to bf16.  Pre-BN biases b1/b2 are intentionally NOT
    included: training-mode BN cancels them.  gamma/beta padding must stay
    exactly zero so padded feature columns remain zero through BN/ReLU.
    """
    z_dim, h_dim = params["w1"].shape
    out_dim = params["w3"].shape[1]
    Zp, Hp, Op = _round_up(z_dim), _round_up(h_dim), _round_up(out_dim)
    return {
        "w1": _pad_to(params["w1"], (Zp, Hp)).astype(jnp.bfloat16),
        "w2": _pad_to(params["w2"], (Hp, Hp)).astype(jnp.bfloat16),
        "w3": _pad_to(params["w3"], (Hp, Op)).astype(jnp.bfloat16),
        "v1": _pad_to(jnp.stack([params["g1"], params["be1"]], 0), (2, Hp)),
        "v2": _pad_to(jnp.stack([params["g2"], params["be2"]], 0), (2, Hp)),
        "b3": _pad_to(params["b3"].reshape(1, -1), (1, Op)),
    }


def densenet_decoder_forward(z, prep, o_dim=1):
    """z: (B, z_dim) float32.  prep: output of prepare_params (cached)."""
    B = z.shape[0]
    out_dim = o_dim * 784
    Zp, Hp = prep["w1"].shape
    Op = prep["w3"].shape[1]

    # Only per-call data prep: pad/cast the activations.  Batch is never
    # padded (BN uses full-batch statistics).
    z_p = _pad_to(z, (B, Zp)).astype(jnp.bfloat16)

    args = (z_p, prep["w1"], prep["v1"], prep["w2"], prep["v2"],
            prep["w3"], prep["b3"])

    # --- VMEM budget (gridless => no double-buffering factor) ---------------
    arg_bytes = sum(int(a.size) * a.dtype.itemsize for a in args)
    out_bytes = B * Op * 4
    scratch_bytes = (Hp * Hp + Hp * Op) * 2          # bf16 w2/w3 VMEM scratch
    act_bytes = 4 * B * (2 * Hp + Op)                # f32 intermediates
    resident = arg_bytes + out_bytes + scratch_bytes + act_bytes
    cap = _vmem_cap_bytes()
    vmem_limit = int(min(resident + (16 << 20), int(cap * 0.85)))

    # --- advisory cost model for XLA scheduling ------------------------------
    flops = 2 * B * (Zp * Hp + Hp * Hp + Hp * Op)
    cost = pl.CostEstimate(flops=flops,
                           transcendentals=2 * B * Hp,
                           bytes_accessed=arg_bytes + out_bytes)

    vmem = pl.BlockSpec(memory_space=pltpu.MemorySpace.VMEM)
    hbm = pl.BlockSpec(memory_space=pl.ANY)  # raw HBM ref; DMA'd in-kernel

    out = pl.pallas_call(
        decoder_kernel,
        out_shape=jax.ShapeDtypeStruct((B, Op), jnp.float32),
        in_specs=[vmem, vmem, vmem, hbm, vmem, hbm, vmem],
        out_specs=vmem,
        scratch_shapes=[
            pltpu.VMEM((Hp, Hp), jnp.bfloat16),   # w2 landing buffer
            pltpu.VMEM((Hp, Op), jnp.bfloat16),   # w3 landing buffer
            pltpu.SemaphoreType.DMA((2,)),
        ],
        compiler_params=pltpu.CompilerParams(vmem_limit_bytes=vmem_limit),
        cost_estimate=cost,
    )(*args)

    return out[:, :out_dim].reshape(B, o_dim, 28, 28)


def init_params(key, z_dim, h_dim, o_dim):
    """Deterministic synthetic parameters (nn.Linear / BatchNorm1d shapes)."""
    out_dim = o_dim * 784
    ks = jax.random.split(key, 6)

    def linear(kw, kb, fan_in, fan_out):
        bound = 1.0 / jnp.sqrt(fan_in)
        # stored as (in, out) == transpose of PyTorch's (out, in)
        w = jax.random.uniform(kw, (fan_in, fan_out), jnp.float32, -bound, bound)
        b = jax.random.uniform(kb, (fan_out,), jnp.float32, -bound, bound)
        return w, b

    w1, b1 = linear(ks[0], ks[1], z_dim, h_dim)
    w2, b2 = linear(ks[2], ks[3], h_dim, h_dim)
    w3, b3 = linear(ks[4], ks[5], h_dim, out_dim)

    return {
        "w1": w1, "b1": b1,
        "g1": jnp.ones((h_dim,), jnp.float32), "be1": jnp.zeros((h_dim,), jnp.float32),
        "w2": w2, "b2": b2,
        "g2": jnp.ones((h_dim,), jnp.float32), "be2": jnp.zeros((h_dim,), jnp.float32),
        "w3": w3, "b3": b3,
    }


def _reference_forward(z, p, o_dim):
    """Pure-JAX mirror of PyTorch semantics (bf16 matmul operands, f32 rest).

    Keeps the pre-BN biases b1/b2 (unlike the kernel) so the test verifies
    that dropping them in the kernel is indeed cancelled by the BN mean.
    """
    def bdot(a, w):
        return jnp.dot(a.astype(jnp.bfloat16), w.astype(jnp.bfloat16),
                       preferred_element_type=jnp.float32)

    def bn_relu(h, g, be):
        m = jnp.mean(h, axis=0, keepdims=True)
        v = jnp.mean((h - m) ** 2, axis=0, keepdims=True)   # biased, training-mode
        return jnp.maximum((h - m) * lax.rsqrt(v + BN_EPS) * g + be, 0.0)

    h = bn_relu(bdot(z, p["w1"]) + p["b1"], p["g1"], p["be1"])
    h = bn_relu(bdot(h, p["w2"]) + p["b2"], p["g2"], p["be2"])
    out = bdot(h, p["w3"]) + p["b3"]
    return out.reshape(-1, o_dim, 28, 28)


if __name__ == "__main__":
    # Module defaults (o_dim=1, h_dim=500, z_dim=50) with a small batch.
    B, O_DIM, H_DIM, Z_DIM = 8, 1, 500, 50

    key = jax.random.PRNGKey(0)
    kz, kp = jax.random.split(key)
    z = jax.random.normal(kz, (B, Z_DIM), jnp.float32)
    params = init_params(kp, Z_DIM, H_DIM, O_DIM)

    # One-time (cached) parameter prep -- hoisted out of the per-call path.
    prep = prepare_params(params)
    prep = {k: jax.block_until_ready(v) for k, v in prep.items()}

    fwd = jax.jit(densenet_decoder_forward, static_argnums=(2,))
    out = fwd(z, prep, O_DIM)
    jax.block_until_ready(out)
    assert out.shape == (B, O_DIM, 28, 28)

    ref = _reference_forward(z, params, O_DIM)
    max_err = float(jnp.max(jnp.abs(out - ref)))
    assert jnp.allclose(out, ref, atol=5e-3, rtol=5e-3), max_err

    print("KERNEL_OK")
</pallas_src>

<mosaic_0001>
module attributes {stable_mosaic.version = 11 : i64} {
  func.func @decoder_kernel(%arg0: memref<8x128xbf16, #tpu.memory_space<vmem>>, %arg1: memref<128x512xbf16, #tpu.memory_space<vmem>>, %arg2: memref<2x512xf32, #tpu.memory_space<vmem>>, %arg3: memref<512x512xbf16, #tpu.memory_space<any>>, %arg4: memref<2x512xf32, #tpu.memory_space<vmem>>, %arg5: memref<512x896xbf16, #tpu.memory_space<any>>, %arg6: memref<1x896xf32, #tpu.memory_space<vmem>>, %arg7: memref<8x896xf32, #tpu.memory_space<vmem>>, %arg8: memref<512x512xbf16, #tpu.memory_space<vmem>>, %arg9: memref<512x896xbf16, #tpu.memory_space<vmem>>, %arg10: memref<2x!tpu.dma_semaphore, #tpu.memory_space<semaphore_mem>>) attributes {dimension_semantics = [], scalar_prefetch = 0 : i64, scratch_operands = 3 : i64, tpu.core_type = #tpu.core_type<tc>} {
    %c0_i32 = arith.constant 0 : i32
    %0 = tpu.memref_slice %arg10[%c0_i32] : memref<2x!tpu.dma_semaphore, #tpu.memory_space<semaphore_mem>> -> memref<1x!tpu.dma_semaphore, #tpu.memory_space<semaphore_mem>>
    %1 = tpu.memref_squeeze %0 : memref<1x!tpu.dma_semaphore, #tpu.memory_space<semaphore_mem>> -> memref<!tpu.dma_semaphore, #tpu.memory_space<semaphore_mem>>
    tpu.enqueue_dma source(%arg3 : memref<512x512xbf16, #tpu.memory_space<any>>) target(%arg8 : memref<512x512xbf16, #tpu.memory_space<vmem>>) target_semaphore(%1 : memref<!tpu.dma_semaphore, #tpu.memory_space<semaphore_mem>>)
    %c1_i32 = arith.constant 1 : i32
    %2 = tpu.memref_slice %arg10[%c1_i32] : memref<2x!tpu.dma_semaphore, #tpu.memory_space<semaphore_mem>> -> memref<1x!tpu.dma_semaphore, #tpu.memory_space<semaphore_mem>>
    %3 = tpu.memref_squeeze %2 : memref<1x!tpu.dma_semaphore, #tpu.memory_space<semaphore_mem>> -> memref<!tpu.dma_semaphore, #tpu.memory_space<semaphore_mem>>
    tpu.enqueue_dma source(%arg5 : memref<512x896xbf16, #tpu.memory_space<any>>) target(%arg9 : memref<512x896xbf16, #tpu.memory_space<vmem>>) target_semaphore(%3 : memref<!tpu.dma_semaphore, #tpu.memory_space<semaphore_mem>>)
    %c0 = arith.constant 0 : index
    %c0_0 = arith.constant 0 : index
    %4 = vector.load %arg0[%c0, %c0_0] : memref<8x128xbf16, #tpu.memory_space<vmem>>, vector<8x128xbf16>
    %c0_1 = arith.constant 0 : index
    %c0_2 = arith.constant 0 : index
    %5 = vector.load %arg1[%c0_1, %c0_2] : memref<128x512xbf16, #tpu.memory_space<vmem>>, vector<128x512xbf16>
    %cst = arith.constant dense<0.000000e+00> : vector<8x512xf32>
    %6 = tpu.matmul %4, %5, %cst {dimension_numbers = #tpu.dot_dimension_numbers<[1], [0], [0], [1], [0, 0, 1, 1], [], []>} : vector<8x128xbf16>, vector<128x512xbf16>, vector<8x512xf32> -> vector<8x512xf32>
    %cst_3 = arith.constant dense<0.000000e+00> : vector<512xf32>
    %7 = vector.multi_reduction <add>, %6, %cst_3 [0] : vector<8x512xf32> to vector<512xf32>
    %8 = vector.shape_cast %7 : vector<512xf32> to vector<1x512xf32>
    %cst_4 = arith.constant 1.250000e-01 : f32
    %9 = vector.broadcast %cst_4 : f32 to vector<1x512xf32>
    %10 = arith.mulf %8, %9 : vector<1x512xf32>
    %11 = vector.broadcast %10 : vector<1x512xf32> to vector<8x512xf32>
    %12 = arith.subf %6, %11 : vector<8x512xf32>
    %13 = arith.mulf %12, %12 : vector<8x512xf32>
    %cst_5 = arith.constant dense<0.000000e+00> : vector<512xf32>
    %14 = vector.multi_reduction <add>, %13, %cst_5 [0] : vector<8x512xf32> to vector<512xf32>
    %15 = vector.shape_cast %14 : vector<512xf32> to vector<1x512xf32>
    %cst_6 = arith.constant 1.250000e-01 : f32
    %16 = vector.broadcast %cst_6 : f32 to vector<1x512xf32>
    %17 = arith.mulf %15, %16 : vector<1x512xf32>
    %cst_7 = arith.constant 9.99999974E-6 : f32
    %18 = vector.broadcast %cst_7 : f32 to vector<1x512xf32>
    %19 = arith.addf %17, %18 : vector<1x512xf32>
    %20 = math.rsqrt %19 : vector<1x512xf32>
    %21 = vector.broadcast %20 : vector<1x512xf32> to vector<8x512xf32>
    %22 = arith.mulf %12, %21 : vector<8x512xf32>
    %c0_8 = arith.constant 0 : index
    %c0_9 = arith.constant 0 : index
    %23 = vector.load %arg2[%c0_8, %c0_9] : memref<2x512xf32, #tpu.memory_space<vmem>>, vector<1x512xf32>
    %24 = vector.broadcast %23 : vector<1x512xf32> to vector<8x512xf32>
    %25 = arith.mulf %22, %24 : vector<8x512xf32>
    %c1 = arith.constant 1 : index
    %c0_10 = arith.constant 0 : index
    %26 = vector.load %arg2[%c1, %c0_10] : memref<2x512xf32, #tpu.memory_space<vmem>>, vector<1x512xf32>
    %27 = vector.broadcast %26 : vector<1x512xf32> to vector<8x512xf32>
    %28 = arith.addf %25, %27 : vector<8x512xf32>
    %cst_11 = arith.constant 0.000000e+00 : f32
    %29 = vector.broadcast %cst_11 : f32 to vector<8x512xf32>
    %30 = arith.maximumf %28, %29 : vector<8x512xf32>
    %c0_i32_12 = arith.constant 0 : i32
    %31 = tpu.memref_slice %arg10[%c0_i32_12] : memref<2x!tpu.dma_semaphore, #tpu.memory_space<semaphore_mem>> -> memref<1x!tpu.dma_semaphore, #tpu.memory_space<semaphore_mem>>
    %32 = tpu.memref_squeeze %31 : memref<1x!tpu.dma_semaphore, #tpu.memory_space<semaphore_mem>> -> memref<!tpu.dma_semaphore, #tpu.memory_space<semaphore_mem>>
    tpu.wait_dma2 semaphore(%32 : memref<!tpu.dma_semaphore, #tpu.memory_space<semaphore_mem>>) src(%arg3 : memref<512x512xbf16, #tpu.memory_space<any>>) dst(%arg8 : memref<512x512xbf16, #tpu.memory_space<vmem>>)
    %33 = arith.truncf %30 : vector<8x512xf32> to vector<8x512xbf16>
    %c0_13 = arith.constant 0 : index
    %c0_14 = arith.constant 0 : index
    %34 = vector.load %arg8[%c0_13, %c0_14] : memref<512x512xbf16, #tpu.memory_space<vmem>>, vector<512x512xbf16>
    %cst_15 = arith.constant dense<0.000000e+00> : vector<8x512xf32>
    %35 = tpu.matmul %33, %34, %cst_15 {dimension_numbers = #tpu.dot_dimension_numbers<[1], [0], [0], [1], [0, 0, 1, 1], [], []>} : vector<8x512xbf16>, vector<512x512xbf16>, vector<8x512xf32> -> vector<8x512xf32>
    %cst_16 = arith.constant dense<0.000000e+00> : vector<512xf32>
    %36 = vector.multi_reduction <add>, %35, %cst_16 [0] : vector<8x512xf32> to vector<512xf32>
    %37 = vector.shape_cast %36 : vector<512xf32> to vector<1x512xf32>
    %cst_17 = arith.constant 1.250000e-01 : f32
    %38 = vector.broadcast %cst_17 : f32 to vector<1x512xf32>
    %39 = arith.mulf %37, %38 : vector<1x512xf32>
    %40 = vector.broadcast %39 : vector<1x512xf32> to vector<8x512xf32>
    %41 = arith.subf %35, %40 : vector<8x512xf32>
    %42 = arith.mulf %41, %41 : vector<8x512xf32>
    %cst_18 = arith.constant dense<0.000000e+00> : vector<512xf32>
    %43 = vector.multi_reduction <add>, %42, %cst_18 [0] : vector<8x512xf32> to vector<512xf32>
    %44 = vector.shape_cast %43 : vector<512xf32> to vector<1x512xf32>
    %cst_19 = arith.constant 1.250000e-01 : f32
    %45 = vector.broadcast %cst_19 : f32 to vector<1x512xf32>
    %46 = arith.mulf %44, %45 : vector<1x512xf32>
    %cst_20 = arith.constant 9.99999974E-6 : f32
    %47 = vector.broadcast %cst_20 : f32 to vector<1x512xf32>
    %48 = arith.addf %46, %47 : vector<1x512xf32>
    %49 = math.rsqrt %48 : vector<1x512xf32>
    %50 = vector.broadcast %49 : vector<1x512xf32> to vector<8x512xf32>
    %51 = arith.mulf %41, %50 : vector<8x512xf32>
    %c0_21 = arith.constant 0 : index
    %c0_22 = arith.constant 0 : index
    %52 = vector.load %arg4[%c0_21, %c0_22] : memref<2x512xf32, #tpu.memory_space<vmem>>, vector<1x512xf32>
    %53 = vector.broadcast %52 : vector<1x512xf32> to vector<8x512xf32>
    %54 = arith.mulf %51, %53 : vector<8x512xf32>
    %c1_23 = arith.constant 1 : index
    %c0_24 = arith.constant 0 : index
    %55 = vector.load %arg4[%c1_23, %c0_24] : memref<2x512xf32, #tpu.memory_space<vmem>>, vector<1x512xf32>
    %56 = vector.broadcast %55 : vector<1x512xf32> to vector<8x512xf32>
    %57 = arith.addf %54, %56 : vector<8x512xf32>
    %cst_25 = arith.constant 0.000000e+00 : f32
    %58 = vector.broadcast %cst_25 : f32 to vector<8x512xf32>
    %59 = arith.maximumf %57, %58 : vector<8x512xf32>
    %c1_i32_26 = arith.constant 1 : i32
    %60 = tpu.memref_slice %arg10[%c1_i32_26] : memref<2x!tpu.dma_semaphore, #tpu.memory_space<semaphore_mem>> -> memref<1x!tpu.dma_semaphore, #tpu.memory_space<semaphore_mem>>
    %61 = tpu.memref_squeeze %60 : memref<1x!tpu.dma_semaphore, #tpu.memory_space<semaphore_mem>> -> memref<!tpu.dma_semaphore, #tpu.memory_space<semaphore_mem>>
    tpu.wait_dma2 semaphore(%61 : memref<!tpu.dma_semaphore, #tpu.memory_space<semaphore_mem>>) src(%arg5 : memref<512x896xbf16, #tpu.memory_space<any>>) dst(%arg9 : memref<512x896xbf16, #tpu.memory_space<vmem>>)
    %62 = arith.truncf %59 : vector<8x512xf32> to vector<8x512xbf16>
    %c0_27 = arith.constant 0 : index
    %c0_28 = arith.constant 0 : index
    %63 = vector.load %arg9[%c0_27, %c0_28] : memref<512x896xbf16, #tpu.memory_space<vmem>>, vector<512x896xbf16>
    %cst_29 = arith.constant dense<0.000000e+00> : vector<8x896xf32>
    %64 = tpu.matmul %62, %63, %cst_29 {dimension_numbers = #tpu.dot_dimension_numbers<[1], [0], [0], [1], [0, 0, 1, 1], [], []>} : vector<8x512xbf16>, vector<512x896xbf16>, vector<8x896xf32> -> vector<8x896xf32>
    %c0_30 = arith.constant 0 : index
    %c0_31 = arith.constant 0 : index
    %65 = vector.load %arg6[%c0_30, %c0_31] : memref<1x896xf32, #tpu.memory_space<vmem>>, vector<1x896xf32>
    %66 = vector.broadcast %65 : vector<1x896xf32> to vector<8x896xf32>
    %67 = arith.addf %64, %66 : vector<8x896xf32>
    %c0_32 = arith.constant 0 : index
    %c0_33 = arith.constant 0 : index
    %68 = vector.load %arg7[%c0_32, %c0_33] : memref<8x896xf32, #tpu.memory_space<vmem>>, vector<8x896xf32>
    tpu.vector_store %arg7[%c0_32, %c0_33], %67 {strides = array<i32>} : memref<8x896xf32, #tpu.memory_space<vmem>>, vector<8x896xf32>,
    return
  }
}

</mosaic_0001>

<llo_original>
// kernel: densenet_decoder_forward.1
$region0: #{densenet_decoder_forward.1}
  #allocation0 [shape = 'u32[]', space=smem, size = 0x4, offset = 0x4, fixed_abs, tag = 'smem constant byte address 0x4 - core index']
  #allocation1 [shape = 'u32[144,128]{1,0:T(1,128)}', space=vmem, size = 0x12000, scoped, tag = 'internal scratch']
  #allocation2 [shape = 'bf16[512,512]{1,0:T(16,128)(2,1)}', space=vmem, size = 0x80000, scoped, tag = 'scratch operand']
  #allocation3 [shape = 'bf16[512,896]{1,0:T(16,128)(2,1)}', space=vmem, size = 0xe0000, scoped, tag = 'scratch operand']
  #allocation4 [shape = 's32[2]{0}', space=sflag, size = 0x8, scoped, tag = 'scratch operand']
  #allocation7 [shape = 's32[]', space=sflag, size = 0x4, offset = 0, fixed_abs, tag = 'sflag constant byte address 0x0 - dummy sync flag']
  #allocation9 [shape = 's32[]', space=sflag, size = 0x4, offset = 0, fixed_abs, tag = 'sflag constant byte address 0x0 - dummy sync flag']
  %s0 = inlined_call_operand.vmem [shape: bf16[8,128], index: 0, kind: input, shape index: {}]
  %s1 = inlined_call_operand.hbm [shape: bf16[128,512], index: 1, kind: input, shape index: {}]
  %s2 = inlined_call_operand.vmem [shape: f32[2,512], index: 2, kind: input, shape index: {}]
  %s3 = inlined_call_operand.hbm [shape: bf16[512,512], index: 3, kind: input, shape index: {}]
  %s4 = inlined_call_operand.vmem [shape: f32[2,512], index: 4, kind: input, shape index: {}]
  %s5 = inlined_call_operand.hbm [shape: bf16[512,896], index: 5, kind: input, shape index: {}]
  %s6 = inlined_call_operand.vmem [shape: f32[1,896], index: 6, kind: input, shape index: {}]
  %s7 = inlined_call_operand.vmem [shape: f32[8,896], index: 7, kind: output, shape index: {}]
  %s8 = sld [smem:[#allocation0]]
  $region34: #{densenet_decoder_forward.1} parent=0
    _
  %s10 = ssub.s32 1, %s8
  %s11 = scalar_select 0, %s10, %s8
  $region1: #{densenet_decoder_forward.1} parent=0
    #allocation5 [shape = 'u8[131072]{0}', space=vmem, size = 0x20000, scoped, tag = 'input window, operand 1, single buffered']
    #allocation6 [shape = 's32[1]{0}', space=sflag, size = 0x4, scoped, tag = 'scoped memory for densenet_decoder_forward.1']
    #allocation8 [shape = 'u32[9]{0}', space=smem, size = 0x24, scoped, tag = 'DMA stride descriptor']
    #allocation10 [shape = 'u32[9]{0}', space=smem, size = 0x24, scoped, tag = 'DMA stride descriptor']
    %12 = vsyncpa [#allocation6], 0
    // Predicated region
    $region2: #{densenet_decoder_forward.1} parent=1 // pred_check
      _
    $region3: #{densenet_decoder_forward.1} parent=1 // pred_check_branch
      %14 = sbr.rel (0) target = $region5
    $region4: #{densenet_decoder_forward.1} parent=1 // pred_region
      _
    $region5: #{densenet_decoder_forward.1} parent=1 // pred_fallthru
      _
    // Predicated region
    $region6: #{densenet_decoder_forward.1} parent=1 // pred_check
      _
    $region7: #{densenet_decoder_forward.1} parent=1 // pred_check_branch
      %16 = sbr.rel (0) target = $region9
    $region8: #{densenet_decoder_forward.1} parent=1 // pred_region
      %s18 = ssub.s32 4096, 4096
      %19 = vsyncadd [#allocation6], %s18
      %s20 = sshll.u32 [#allocation5], 4
      %s21 = int_to_ptr.vmem [resolvable:$true] %s20
      %26 = dma.hbm_to_vmem [thread:$0]  %s1, 4096, %s21, [#allocation6], 256, 256, 16
    $region9: #{densenet_decoder_forward.1} parent=1 // pred_fallthru
      _
    // Predicated region
    $region10: #{densenet_decoder_forward.1} parent=1 // pred_check
      _
    $region11: #{densenet_decoder_forward.1} parent=1 // pred_check_branch
      %28 = sbr.rel (0) target = $region13
    $region12: #{densenet_decoder_forward.1} parent=1 // pred_region
      _
    $region13: #{densenet_decoder_forward.1} parent=1 // pred_fallthru
      _
    // Predicated region
    $region14: #{densenet_decoder_forward.1} parent=1 // pred_check
      _
    $region15: #{densenet_decoder_forward.1} parent=1 // pred_check_branch
      %30 = sbr.rel (0) target = $region17
    $region16: #{densenet_decoder_forward.1} parent=1 // pred_region
      _
    $region17: #{densenet_decoder_forward.1} parent=1 // pred_fallthru
      _
    // Predicated region
    $region18: #{densenet_decoder_forward.1} parent=1 // pred_check
      _
    $region19: #{densenet_decoder_forward.1} parent=1 // pred_check_branch
      %32 = sbr.rel (0) target = $region21
    $region20: #{densenet_decoder_forward.1} parent=1 // pred_region
      _
    $region21: #{densenet_decoder_forward.1} parent=1 // pred_fallthru
      _
    // Predicated region
    $region22: #{densenet_decoder_forward.1} parent=1 // pred_check
      _
    $region23: #{densenet_decoder_forward.1} parent=1 // pred_check_branch
      %34 = sbr.rel (0) target = $region25
    $region24: #{densenet_decoder_forward.1} parent=1 // pred_region
      %35 = dma.done [#allocation6], 4096
    $region25: #{densenet_decoder_forward.1} parent=1 // pred_fallthru
      _
    %s38 = sshll.u32 1, 14
    %s39 = sxor.u32 4294967295, %s38
    %s41 = sld [smem:[#allocation0]]
    %s42 = sadd.s32 2, %s41
    %s44 = sshll.u32 7, 26
    %s45 = sxor.u32 4294967295, %s44
    %s46 = sand.u32 0, %s45
    %s47 = sshll.u32 %s42, 26
    %s48 = sor.u32 %s46, %s47
    %s49 = sshll.u32 [#allocation2], 4
    %s50 = int_to_ptr.vmem [resolvable:$true] %s49
    %53 = sst [smem:[#allocation8]] 512
    %s54 = scalar_lea.smem [#allocation8], 1
    %55 = sst [smem:[%s54]] 512
    %s56 = scalar_lea.smem [#allocation8], 2
    %57 = sst [smem:[%s56]] 4
    %s58 = scalar_lea.smem [#allocation8], 3
    %59 = sst [smem:[%s58]] 64
    %s60 = scalar_lea.smem [#allocation8], 4
    %61 = sst [smem:[%s60]] 128
    %s62 = scalar_lea.smem [#allocation8], 5
    %63 = sst [smem:[%s62]] 2
    %s64 = scalar_lea.smem [#allocation8], 6
    %65 = sst [smem:[%s64]] 256
    %s66 = scalar_lea.smem [#allocation8], 7
    %67 = sst [smem:[%s66]] 64
    %s68 = scalar_lea.smem [#allocation8], 8
    %69 = sst [smem:[%s68]] 4
    %71 = dma.general %s3, 16384, %s50, [#allocation4], [#allocation7], [#allocation8], %s48, 0
    %s72 = scalar_lea.sflag [#allocation4], 1
    %s74 = sshll.u32 1, 14
    %s75 = sxor.u32 4294967295, %s74
    %s77 = sadd.s32 2, %s41
    %s79 = sshll.u32 7, 26
    %s80 = sxor.u32 4294967295, %s79
    %s81 = sand.u32 0, %s80
    %s82 = sshll.u32 %s77, 26
    %s83 = sor.u32 %s81, %s82
    %s84 = sshll.u32 [#allocation3], 4
    %s85 = int_to_ptr.vmem [resolvable:$true] %s84
    %88 = sst [smem:[#allocation10]] 896
    %s89 = scalar_lea.smem [#allocation10], 1
    %90 = sst [smem:[%s89]] 896
    %s91 = scalar_lea.smem [#allocation10], 2
    %92 = sst [smem:[%s91]] 7
    %s93 = scalar_lea.smem [#allocation10], 3
    %94 = sst [smem:[%s93]] 64
    %s95 = scalar_lea.smem [#allocation10], 4
    %96 = sst [smem:[%s95]] 128
    %s97 = scalar_lea.smem [#allocation10], 5
    %98 = sst [smem:[%s97]] 2
    %s99 = scalar_lea.smem [#allocation10], 6
    %100 = sst [smem:[%s99]] 448
    %s101 = scalar_lea.smem [#allocation10], 7
    %102 = sst [smem:[%s101]] 64
    %s103 = scalar_lea.smem [#allocation10], 8
    %104 = sst [smem:[%s103]] 4
    %106 = dma.general %s5, 28672, %s85, %s72, [#allocation9], [#allocation10], %s83, 0
    %v107 = vld [vmem:[%s0] sm:$0xf]
    %v108 = vld [vmem:[#allocation5] sm:$0xff]
    %v109 = vld [vmem:[#allocation5 + $0x8] sm:$0xff]
    %v110 = vld [vmem:[#allocation5 + $0x10] sm:$0xff]
    %v111 = vld [vmem:[#allocation5 + $0x18] sm:$0xff]
    %v112 = vld [vmem:[#allocation5 + $0x20] sm:$0xff]
    %v113 = vld [vmem:[#allocation5 + $0x28] sm:$0xff]
    %v114 = vld [vmem:[#allocation5 + $0x30] sm:$0xff]
    %v115 = vld [vmem:[#allocation5 + $0x38] sm:$0xff]
    %v116 = vld [vmem:[#allocation5 + $0x40] sm:$0xff]
    %v117 = vld [vmem:[#allocation5 + $0x48] sm:$0xff]
    %v118 = vld [vmem:[#allocation5 + $0x50] sm:$0xff]
    %v119 = vld [vmem:[#allocation5 + $0x58] sm:$0xff]
    %v120 = vld [vmem:[#allocation5 + $0x60] sm:$0xff]
    %v121 = vld [vmem:[#allocation5 + $0x68] sm:$0xff]
    %v122 = vld [vmem:[#allocation5 + $0x70] sm:$0xff]
    %v123 = vld [vmem:[#allocation5 + $0x78] sm:$0xff]
    %v124 = vld [vmem:[#allocation5 + $0x80] sm:$0xff]
    %v125 = vld [vmem:[#allocation5 + $0x88] sm:$0xff]
    %v126 = vld [vmem:[#allocation5 + $0x90] sm:$0xff]
    %v127 = vld [vmem:[#allocation5 + $0x98] sm:$0xff]
    %v128 = vld [vmem:[#allocation5 + $0xa0] sm:$0xff]
    %v129 = vld [vmem:[#allocation5 + $0xa8] sm:$0xff]
    %v130 = vld [vmem:[#allocation5 + $0xb0] sm:$0xff]
    %v131 = vld [vmem:[#allocation5 + $0xb8] sm:$0xff]
    %v132 = vld [vmem:[#allocation5 + $0xc0] sm:$0xff]
    %v133 = vld [vmem:[#allocation5 + $0xc8] sm:$0xff]
    %v134 = vld [vmem:[#allocation5 + $0xd0] sm:$0xff]
    %v135 = vld [vmem:[#allocation5 + $0xd8] sm:$0xff]
    %v136 = vld [vmem:[#allocation5 + $0xe0] sm:$0xff]
    %v137 = vld [vmem:[#allocation5 + $0xe8] sm:$0xff]
    %v138 = vld [vmem:[#allocation5 + $0xf0] sm:$0xff]
    %v139 = vld [vmem:[#allocation5 + $0xf8] sm:$0xff]
    %v172 = vunpack.c.l.b16 %v108
    %v173 = vunpack.c.h.b16 %v108
    %v174 = vunpack.c.l.b16 %v109
    %v175 = vunpack.c.h.b16 %v109
    %v176 = vunpack.c.l.b16 %v110
    %v177 = vunpack.c.h.b16 %v110
    %v178 = vunpack.c.l.b16 %v111
    %v179 = vunpack.c.h.b16 %v111
    %v180 = vunpack.c.l.b16 %v112
    %v181 = vunpack.c.h.b16 %v112
    %v182 = vunpack.c.l.b16 %v113
    %v183 = vunpack.c.h.b16 %v113
    %v184 = vunpack.c.l.b16 %v114
    %v185 = vunpack.c.h.b16 %v114
    %v186 = vunpack.c.l.b16 %v115
    %v187 = vunpack.c.h.b16 %v115
    %v188 = vunpack.c.l.b16 %v116
    %v189 = vunpack.c.h.b16 %v116
    %v190 = vunpack.c.l.b16 %v117
    %v191 = vunpack.c.h.b16 %v117
    %v192 = vunpack.c.l.b16 %v118
    %v193 = vunpack.c.h.b16 %v118
    %v194 = vunpack.c.l.b16 %v119
    %v195 = vunpack.c.h.b16 %v119
    %v196 = vunpack.c.l.b16 %v120
    %v197 = vunpack.c.h.b16 %v120
    %v198 = vunpack.c.l.b16 %v121
    %v199 = vunpack.c.h.b16 %v121
    %v200 = vunpack.c.l.b16 %v122
    %v201 = vunpack.c.h.b16 %v122
    %v202 = vunpack.c.l.b16 %v123
    %v203 = vunpack.c.h.b16 %v123
    %v204 = vunpack.c.l.b16 %v124
    %v205 = vunpack.c.h.b16 %v124
    %v206 = vunpack.c.l.b16 %v125
    %v207 = vunpack.c.h.b16 %v125
    %v208 = vunpack.c.l.b16 %v126
    %v209 = vunpack.c.h.b16 %v126
    %v210 = vunpack.c.l.b16 %v127
    %v211 = vunpack.c.h.b16 %v127
    %v212 = vunpack.c.l.b16 %v128
    %v213 = vunpack.c.h.b16 %v128
    %v214 = vunpack.c.l.b16 %v129
    %v215 = vunpack.c.h.b16 %v129
    %v216 = vunpack.c.l.b16 %v130
    %v217 = vunpack.c.h.b16 %v130
    %v218 = vunpack.c.l.b16 %v131
    %v219 = vunpack.c.h.b16 %v131
    %v220 = vunpack.c.l.b16 %v132
    %v221 = vunpack.c.h.b16 %v132
    %v222 = vunpack.c.l.b16 %v133
    %v223 = vunpack.c.h.b16 %v133
    %v224 = vunpack.c.l.b16 %v134
    %v225 = vunpack.c.h.b16 %v134
    %v226 = vunpack.c.l.b16 %v135
    %v227 = vunpack.c.h.b16 %v135
    %v228 = vunpack.c.l.b16 %v136
    %v229 = vunpack.c.h.b16 %v136
    %v230 = vunpack.c.l.b16 %v137
    %v231 = vunpack.c.h.b16 %v137
    %v232 = vunpack.c.l.b16 %v138
    %v233 = vunpack.c.h.b16 %v138
    %v234 = vunpack.c.l.b16 %v139
    %v235 = vunpack.c.h.b16 %v139
    %v236 = vpack.c.b16 %v176, %v172
    %v237 = vpack.c.b16 %v177, %v173
    %v238 = vpack.c.b16 %v178, %v174
    %v239 = vpack.c.b16 %v179, %v175
    %v240 = vpack.c.b16 %v184, %v180
    %v241 = vpack.c.b16 %v185, %v181
    %v242 = vpack.c.b16 %v186, %v182
    %v243 = vpack.c.b16 %v187, %v183
    %v244 = vpack.c.b16 %v192, %v188
    %v245 = vpack.c.b16 %v193, %v189
    %v246 = vpack.c.b16 %v194, %v190
    %v247 = vpack.c.b16 %v195, %v191
    %v248 = vpack.c.b16 %v200, %v196
    %v249 = vpack.c.b16 %v201, %v197
    %v250 = vpack.c.b16 %v202, %v198
    %v251 = vpack.c.b16 %v203, %v199
    %v252 = vpack.c.b16 %v208, %v204
    %v253 = vpack.c.b16 %v209, %v205
    %v254 = vpack.c.b16 %v210, %v206
    %v255 = vpack.c.b16 %v211, %v207
    %v256 = vpack.c.b16 %v216, %v212
    %v257 = vpack.c.b16 %v217, %v213
    %v258 = vpack.c.b16 %v218, %v214
    %v259 = vpack.c.b16 %v219, %v215
    %v260 = vpack.c.b16 %v224, %v220
    %v261 = vpack.c.b16 %v225, %v221
    %v262 = vpack.c.b16 %v226, %v222
    %v263 = vpack.c.b16 %v227, %v223
    %v264 = vpack.c.b16 %v232, %v228
    %v265 = vpack.c.b16 %v233, %v229
    %v266 = vpack.c.b16 %v234, %v230
    %v267 = vpack.c.b16 %v235, %v231
    %300 = vmatprep.subr.bf16.mxu0 %v237
    %301 = vmatpush1.bf16.msra.mxu0 %v236
    %302 = vmatprep.subr.bf16.mxu0 %v241
    %303 = vmatpush1.bf16.msra.mxu0 %v240
    %304 = vmatprep.subr.bf16.mxu0 %v245
    %305 = vmatpush1.bf16.msra.mxu0 %v244
    %306 = vmatprep.subr.bf16.mxu0 %v249
    %307 = vmatpush1.bf16.msra.mxu0 %v248
    %308 = vmatprep.subr.bf16.mxu0 %v253
    %309 = vmatpush1.bf16.msra.mxu0 %v252
    %310 = vmatprep.subr.bf16.mxu0 %v257
    %311 = vmatpush1.bf16.msra.mxu0 %v256
    %312 = vmatprep.subr.bf16.mxu0 %v261
    %313 = vmatpush1.bf16.msra.mxu0 %v260
    %314 = vmatprep.subr.bf16.mxu0 %v265
    %315 = vmatpush1.bf16.msra.mxu0 %v264
    %316 = vmatprep.subr.bf16.mxu0 0
    %317 = vmatpush1.bf16.msra.mxu0 0
    %318 = vmatprep.subr.bf16.mxu0 0
    %319 = vmatpush1.bf16.msra.mxu0 0
    %320 = vmatprep.subr.bf16.mxu0 0
    %321 = vmatpush1.bf16.msra.mxu0 0
    %322 = vmatprep.subr.bf16.mxu0 0
    %323 = vmatpush1.bf16.msra.mxu0 0
    %324 = vmatprep.subr.bf16.mxu0 0
    %325 = vmatpush1.bf16.msra.mxu0 0
    %326 = vmatprep.subr.bf16.mxu0 0
    %327 = vmatpush1.bf16.msra.mxu0 0
    %328 = vmatprep.subr.bf16.mxu0 0
    %329 = vmatpush1.bf16.msra.mxu0 0
    %330 = vmatprep.subr.bf16.mxu0 0
    %331 = vmatpush1.bf16.msra.mxu0 0
    %332 = vmatprep.mubr.bf16.mxu0 0
    %333 = vmatmul.mubr.bf16.gmra.mrb[0].mxu0 %v107
    %v334 = vpop.f32.mrb[0].mxu0
    %v335 = vadd.f32 0.0, %v334
    %v336 = vpop.f32.mrb[0].mxu0
    %v337 = vadd.f32 0.0, %v336
    %v338 = vpop.f32.mrb[0].mxu0
    %v339 = vpop.f32.mrb[0].mxu0
    %340 = vdwg.mxu0
    %341 = vmatprep.subr.bf16.mxu0 %v239
    %342 = vmatpush1.bf16.msra.mxu0 %v238
    %343 = vmatprep.subr.bf16.mxu0 %v243
    %344 = vmatpush1.bf16.msra.mxu0 %v242
    %345 = vmatprep.subr.bf16.mxu0 %v247
    %346 = vmatpush1.bf16.msra.mxu0 %v246
    %347 = vmatprep.subr.bf16.mxu0 %v251
    %348 = vmatpush1.bf16.msra.mxu0 %v250
    %349 = vmatprep.subr.bf16.mxu0 %v255
    %350 = vmatpush1.bf16.msra.mxu0 %v254
    %351 = vmatprep.subr.bf16.mxu0 %v259
    %352 = vmatpush1.bf16.msra.mxu0 %v258
    %353 = vmatprep.subr.bf16.mxu0 %v263
    %354 = vmatpush1.bf16.msra.mxu0 %v262
    %355 = vmatprep.subr.bf16.mxu0 %v267
    %356 = vmatpush1.bf16.msra.mxu0 %v266
    %357 = vmatprep.subr.bf16.mxu0 0
    %358 = vmatpush1.bf16.msra.mxu0 0
    %359 = vmatprep.subr.bf16.mxu0 0
    %360 = vmatpush1.bf16.msra.mxu0 0
    %361 = vmatprep.subr.bf16.mxu0 0
    %362 = vmatpush1.bf16.msra.mxu0 0
    %363 = vmatprep.subr.bf16.mxu0 0
    %364 = vmatpush1.bf16.msra.mxu0 0
    %365 = vmatprep.subr.bf16.mxu0 0
    %366 = vmatpush1.bf16.msra.mxu0 0
    %367 = vmatprep.subr.bf16.mxu0 0
    %368 = vmatpush1.bf16.msra.mxu0 0
    %369 = vmatprep.subr.bf16.mxu0 0
    %370 = vmatpush1.bf16.msra.mxu0 0
    %371 = vmatprep.subr.bf16.mxu0 0
    %372 = vmatpush1.bf16.msra.mxu0 0
    %373 = vmatprep.mubr.bf16.mxu0 0
    %374 = vmatmul.mubr.bf16.gmra.mrb[0].mxu0 %v107
    %v375 = vpop.f32.mrb[0].mxu0
    %v376 = vadd.f32 0.0, %v375
    %v377 = vpop.f32.mrb[0].mxu0
    %v378 = vadd.f32 0.0, %v377
    %v379 = vpop.f32.mrb[0].mxu0
    %v380 = vpop.f32.mrb[0].mxu0
    %381 = vdwg.mxu0
    %v382 = vrot.slane %v335, 4
    %v383 = vadd.f32 %v335, %v382
    %v384 = vrot.slane %v383, 2
    %v385 = vadd.f32 %v383, %v384
    %v386 = vrot.slane %v385, 1
    %v387 = vadd.f32 %v385, %v386
    %v388 = vrot.slane %v337, 4
    %v389 = vadd.f32 %v337, %v388
    %v390 = vrot.slane %v389, 2
    %v391 = vadd.f32 %v389, %v390
    %v392 = vrot.slane %v391, 1
    %v393 = vadd.f32 %v391, %v392
    %v394 = vrot.slane %v376, 4
    %v395 = vadd.f32 %v376, %v394
    %v396 = vrot.slane %v395, 2
    %v397 = vadd.f32 %v395, %v396
    %v398 = vrot.slane %v397, 1
    %v399 = vadd.f32 %v397, %v398
    %v400 = vrot.slane %v378, 4
    %v401 = vadd.f32 %v378, %v400
    %v402 = vrot.slane %v401, 2
    %v403 = vadd.f32 %v401, %v402
    %v404 = vrot.slane %v403, 1
    %v405 = vadd.f32 %v403, %v404
    %v406 = vmul.f32 %v387, 0.125
    %v407 = vmul.f32 %v393, 0.125
    %v408 = vmul.f32 %v399, 0.125
    %v409 = vmul.f32 %v405, 0.125
    %v410 = vsub.f32 %v335, %v406
    %v411 = vsub.f32 %v337, %v407
    %v412 = vsub.f32 %v376, %v408
    %v413 = vsub.f32 %v378, %v409
    %v414 = vmul.f32 %v410, %v410
    %v415 = vmul.f32 %v411, %v411
    %v416 = vmul.f32 %v412, %v412
    %v417 = vmul.f32 %v413, %v413
    %v418 = vrot.slane %v414, 4
    %v419 = vadd.f32 %v414, %v418
    %v420 = vrot.slane %v419, 2
    %v421 = vadd.f32 %v419, %v420
    %v422 = vrot.slane %v421, 1
    %v423 = vadd.f32 %v421, %v422
    %v424 = vrot.slane %v415, 4
    %v425 = vadd.f32 %v415, %v424
    %v426 = vrot.slane %v425, 2
    %v427 = vadd.f32 %v425, %v426
    %v428 = vrot.slane %v427, 1
    %v429 = vadd.f32 %v427, %v428
    %v430 = vrot.slane %v416, 4
    %v431 = vadd.f32 %v416, %v430
    %v432 = vrot.slane %v431, 2
    %v433 = vadd.f32 %v431, %v432
    %v434 = vrot.slane %v433, 1
    %v435 = vadd.f32 %v433, %v434
    %v436 = vrot.slane %v417, 4
    %v437 = vadd.f32 %v417, %v436
    %v438 = vrot.slane %v437, 2
    %v439 = vadd.f32 %v437, %v438
    %v440 = vrot.slane %v439, 1
    %v441 = vadd.f32 %v439, %v440
    %v442 = vmul.f32 %v423, 0.125
    %v443 = vmul.f32 %v429, 0.125
    %v444 = vmul.f32 %v435, 0.125
    %v445 = vmul.f32 %v441, 0.125
    %v446 = vadd.f32 %v442, 1e-05
    %v447 = vadd.f32 %v443, 1e-05
    %v448 = vadd.f32 %v444, 1e-05
    %v449 = vadd.f32 %v445, 1e-05
    %v450 = vrsqrt.pop %v446
    %v451 = vrsqrt.pop %v447
    %v452 = vrsqrt.pop %v448
    %v453 = vrsqrt.pop %v449
    %v454 = vmul.f32 %v410, %v450
    %v455 = vmul.f32 %v411, %v451
    %v456 = vmul.f32 %v412, %v452
    %v457 = vmul.f32 %v413, %v453
    %v458 = vld [vmem:[%s2] ss:$2 sm:$0xf]
    %v460 = vlaneseq
    %v461 = vshrl.u32 %v460, 7
    %v462 = vsub.s32 0, %v461
    %v463 = vrot.slane %v458, %v462
    %v464 = vlaneseq
    %v465 = vshrl.u32 %v464, 7
    %v466 = vsub.s32 1, %v465
    %v467 = vrot.slane %v458, %v466
    %v468 = vlaneseq
    %v469 = vshrl.u32 %v468, 7
    %v470 = vsub.s32 2, %v469
    %v471 = vrot.slane %v458, %v470
    %v472 = vlaneseq
    %v473 = vshrl.u32 %v472, 7
    %v474 = vsub.s32 3, %v473
    %v475 = vrot.slane %v458, %v474
    %v480 = vmul.f32 %v454, %v463
    %v481 = vmul.f32 %v455, %v467
    %v482 = vmul.f32 %v456, %v471
    %v483 = vmul.f32 %v457, %v475
    %s484 = scalar_lea.vmem %s2, 1
    %v485 = vld [vmem:[%s484] ss:$2 sm:$0xf]
    %v487 = vlaneseq
    %v488 = vshrl.u32 %v487, 7
    %v489 = vsub.s32 0, %v488
    %v490 = vrot.slane %v485, %v489
    %v491 = vlaneseq
    %v492 = vshrl.u32 %v491, 7
    %v493 = vsub.s32 1, %v492
    %v494 = vrot.slane %v485, %v493
    %v495 = vlaneseq
    %v496 = vshrl.u32 %v495, 7
    %v497 = vsub.s32 2, %v496
    %v498 = vrot.slane %v485, %v497
    %v499 = vlaneseq
    %v500 = vshrl.u32 %v499, 7
    %v501 = vsub.s32 3, %v500
    %v502 = vrot.slane %v485, %v501
    %v507 = vadd.f32 %v480, %v490
    %v508 = vadd.f32 %v481, %v494
    %v509 = vadd.f32 %v482, %v498
    %v510 = vadd.f32 %v483, %v502
    %v511 = vmax.f32 %v507, 0.0
    %v512 = vmax.f32 %v508, 0.0
    %v513 = vmax.f32 %v509, 0.0
    %v514 = vmax.f32 %v510, 0.0
    %s515 = smul.u32 4, 64
    %s516 = smul.u32 %s515, 4
    %s517 = sshll.u32 %s516, 4
    %518 = dma.done [#allocation4], %s517
    %v519 = vpack.c.bf16 %v511, %v511
    %v520 = vpack.c.bf16 %v512, %v512
    %v521 = vpack.c.bf16 %v513, %v513
    %v522 = vpack.c.bf16 %v514, %v514
    %v523 = vld [vmem:[#allocation2] sm:$0xff]
    %v524 = vld [vmem:[#allocation2 + $0x8] sm:$0xff]
    %v525 = vld [vmem:[#allocation2 + $0x10] sm:$0xff]
    %v526 = vld [vmem:[#allocation2 + $0x18] sm:$0xff]
    %v527 = vld [vmem:[#allocation2 + $0x20] sm:$0xff]
    %v528 = vld [vmem:[#allocation2 + $0x28] sm:$0xff]
    %v529 = vld [vmem:[#allocation2 + $0x30] sm:$0xff]
    %v530 = vld [vmem:[#allocation2 + $0x38] sm:$0xff]
    %v531 = vld [vmem:[#allocation2 + $0x40] sm:$0xff]
    %v532 = vld [vmem:[#allocation2 + $0x48] sm:$0xff]
    %v533 = vld [vmem:[#allocation2 + $0x50] sm:$0xff]
    %v534 = vld [vmem:[#allocation2 + $0x58] sm:$0xff]
    %v535 = vld [vmem:[#allocation2 + $0x60] sm:$0xff]
    %v536 = vld [vmem:[#allocation2 + $0x68] sm:$0xff]
    %v537 = vld [vmem:[#allocation2 + $0x70] sm:$0xff]
    %v538 = vld [vmem:[#allocation2 + $0x78] sm:$0xff]
    %v539 = vld [vmem:[#allocation2 + $0x80] sm:$0xff]
    %v540 = vld [vmem:[#allocation2 + $0x88] sm:$0xff]
    %v541 = vld [vmem:[#allocation2 + $0x90] sm:$0xff]
    %v542 = vld [vmem:[#allocation2 + $0x98] sm:$0xff]
    %v543 = vld [vmem:[#allocation2 + $0xa0] sm:$0xff]
    %v544 = vld [vmem:[#allocation2 + $0xa8] sm:$0xff]
    %v545 = vld [vmem:[#allocation2 + $0xb0] sm:$0xff]
    %v546 = vld [vmem:[#allocation2 + $0xb8] sm:$0xff]
    %v547 = vld [vmem:[#allocation2 + $0xc0] sm:$0xff]
    %v548 = vld [vmem:[#allocation2 + $0xc8] sm:$0xff]
    %v549 = vld [vmem:[#allocation2 + $0xd0] sm:$0xff]
    %v550 = vld [vmem:[#allocation2 + $0xd8] sm:$0xff]
    %v551 = vld [vmem:[#allocation2 + $0xe0] sm:$0xff]
    %v552 = vld [vmem:[#allocation2 + $0xe8] sm:$0xff]
    %v553 = vld [vmem:[#allocation2 + $0xf0] sm:$0xff]
    %v554 = vld [vmem:[#allocation2 + $0xf8] sm:$0xff]
    %v555 = vld [vmem:[#allocation2 + $0x100] sm:$0xff]
    %v556 = vld [vmem:[#allocation2 + $0x108] sm:$0xff]
    %v557 = vld [vmem:[#allocation2 + $0x110] sm:$0xff]
    %v558 = vld [vmem:[#allocation2 + $0x118] sm:$0xff]
    %v559 = vld [vmem:[#allocation2 + $0x120] sm:$0xff]
    %v560 = vld [vmem:[#allocation2 + $0x128] sm:$0xff]
    %v561 = vld [vmem:[#allocation2 + $0x130] sm:$0xff]
    %v562 = vld [vmem:[#allocation2 + $0x138] sm:$0xff]
    %v563 = vld [vmem:[#allocation2 + $0x140] sm:$0xff]
    %v564 = vld [vmem:[#allocation2 + $0x148] sm:$0xff]
    %v565 = vld [vmem:[#allocation2 + $0x150] sm:$0xff]
    %v566 = vld [vmem:[#allocation2 + $0x158] sm:$0xff]
    %v567 = vld [vmem:[#allocation2 + $0x160] sm:$0xff]
    %v568 = vld [vmem:[#allocation2 + $0x168] sm:$0xff]
    %v569 = vld [vmem:[#allocation2 + $0x170] sm:$0xff]
    %v570 = vld [vmem:[#allocation2 + $0x178] sm:$0xff]
    %v571 = vld [vmem:[#allocation2 + $0x180] sm:$0xff]
    %v572 = vld [vmem:[#allocation2 + $0x188] sm:$0xff]
    %v573 = vld [vmem:[#allocation2 + $0x190] sm:$0xff]
    %v574 = vld [vmem:[#allocation2 + $0x198] sm:$0xff]
    %v575 = vld [vmem:[#allocation2 + $0x1a0] sm:$0xff]
    %v576 = vld [vmem:[#allocation2 + $0x1a8] sm:$0xff]
    %v577 = vld [vmem:[#allocation2 + $0x1b0] sm:$0xff]
    %v578 = vld [vmem:[#allocation2 + $0x1b8] sm:$0xff]
    %v579 = vld [vmem:[#allocation2 + $0x1c0] sm:$0xff]
    %v580 = vld [vmem:[#allocation2 + $0x1c8] sm:$0xff]
    %v581 = vld [vmem:[#allocation2 + $0x1d0] sm:$0xff]
    %v582 = vld [vmem:[#allocation2 + $0x1d8] sm:$0xff]
    %v583 = vld [vmem:[#allocation2 + $0x1e0] sm:$0xff]
    %v584 = vld [vmem:[#allocation2 + $0x1e8] sm:$0xff]
    %v585 = vld [vmem:[#allocation2 + $0x1f0] sm:$0xff]
    %v586 = vld [vmem:[#allocation2 + $0x1f8] sm:$0xff]
    %v587 = vld [vmem:[#allocation2 + $0x200] sm:$0xff]
    %v588 = vld [vmem:[#allocation2 + $0x208] sm:$0xff]
    %v589 = vld [vmem:[#allocation2 + $0x210] sm:$0xff]
    %v590 = vld [vmem:[#allocation2 + $0x218] sm:$0xff]
    %v591 = vld [vmem:[#allocation2 + $0x220] sm:$0xff]
    %v592 = vld [vmem:[#allocation2 + $0x228] sm:$0xff]
    %v593 = vld [vmem:[#allocation2 + $0x230] sm:$0xff]
    %v594 = vld [vmem:[#allocation2 + $0x238] sm:$0xff]
    %v595 = vld [vmem:[#allocation2 + $0x240] sm:$0xff]
    %v596 = vld [vmem:[#allocation2 + $0x248] sm:$0xff]
    %v597 = vld [vmem:[#allocation2 + $0x250] sm:$0xff]
    %v598 = vld [vmem:[#allocation2 + $0x258] sm:$0xff]
    %v599 = vld [vmem:[#allocation2 + $0x260] sm:$0xff]
    %v600 = vld [vmem:[#allocation2 + $0x268] sm:$0xff]
    %v601 = vld [vmem:[#allocation2 + $0x270] sm:$0xff]
    %v602 = vld [vmem:[#allocation2 + $0x278] sm:$0xff]
    %v603 = vld [vmem:[#allocation2 + $0x280] sm:$0xff]
    %v604 = vld [vmem:[#allocation2 + $0x288] sm:$0xff]
    %v605 = vld [vmem:[#allocation2 + $0x290] sm:$0xff]
    %v606 = vld [vmem:[#allocation2 + $0x298] sm:$0xff]
    %v607 = vld [vmem:[#allocation2 + $0x2a0] sm:$0xff]
    %v608 = vld [vmem:[#allocation2 + $0x2a8] sm:$0xff]
    %v609 = vld [vmem:[#allocation2 + $0x2b0] sm:$0xff]
    %v610 = vld [vmem:[#allocation2 + $0x2b8] sm:$0xff]
    %v611 = vld [vmem:[#allocation2 + $0x2c0] sm:$0xff]
    %v612 = vld [vmem:[#allocation2 + $0x2c8] sm:$0xff]
    %v613 = vld [vmem:[#allocation2 + $0x2d0] sm:$0xff]
    %v614 = vld [vmem:[#allocation2 + $0x2d8] sm:$0xff]
    %v615 = vld [vmem:[#allocation2 + $0x2e0] sm:$0xff]
    %v616 = vld [vmem:[#allocation2 + $0x2e8] sm:$0xff]
    %v617 = vld [vmem:[#allocation2 + $0x2f0] sm:$0xff]
    %v618 = vld [vmem:[#allocation2 + $0x2f8] sm:$0xff]
    %v619 = vld [vmem:[#allocation2 + $0x300] sm:$0xff]
    %v620 = vld [vmem:[#allocation2 + $0x308] sm:$0xff]
    %v621 = vld [vmem:[#allocation2 + $0x310] sm:$0xff]
    %v622 = vld [vmem:[#allocation2 + $0x318] sm:$0xff]
    %v623 = vld [vmem:[#allocation2 + $0x320] sm:$0xff]
    %v624 = vld [vmem:[#allocation2 + $0x328] sm:$0xff]
    %v625 = vld [vmem:[#allocation2 + $0x330] sm:$0xff]
    %v626 = vld [vmem:[#allocation2 + $0x338] sm:$0xff]
    %v627 = vld [vmem:[#allocation2 + $0x340] sm:$0xff]
    %v628 = vld [vmem:[#allocation2 + $0x348] sm:$0xff]
    %v629 = vld [vmem:[#allocation2 + $0x350] sm:$0xff]
    %v630 = vld [vmem:[#allocation2 + $0x358] sm:$0xff]
    %v631 = vld [vmem:[#allocation2 + $0x360] sm:$0xff]
    %v632 = vld [vmem:[#allocation2 + $0x368] sm:$0xff]
    %v633 = vld [vmem:[#allocation2 + $0x370] sm:$0xff]
    %v634 = vld [vmem:[#allocation2 + $0x378] sm:$0xff]
    %v635 = vld [vmem:[#allocation2 + $0x380] sm:$0xff]
    %v636 = vld [vmem:[#allocation2 + $0x388] sm:$0xff]
    %v637 = vld [vmem:[#allocation2 + $0x390] sm:$0xff]
    %v638 = vld [vmem:[#allocation2 + $0x398] sm:$0xff]
    %v639 = vld [vmem:[#allocation2 + $0x3a0] sm:$0xff]
    %v640 = vld [vmem:[#allocation2 + $0x3a8] sm:$0xff]
    %v641 = vld [vmem:[#allocation2 + $0x3b0] sm:$0xff]
    %v642 = vld [vmem:[#allocation2 + $0x3b8] sm:$0xff]
    %v643 = vld [vmem:[#allocation2 + $0x3c0] sm:$0xff]
    %v644 = vld [vmem:[#allocation2 + $0x3c8] sm:$0xff]
    %v645 = vld [vmem:[#allocation2 + $0x3d0] sm:$0xff]
    %v646 = vld [vmem:[#allocation2 + $0x3d8] sm:$0xff]
    %v647 = vld [vmem:[#allocation2 + $0x3e0] sm:$0xff]
    %v648 = vld [vmem:[#allocation2 + $0x3e8] sm:$0xff]
    %v649 = vld [vmem:[#allocation2 + $0x3f0] sm:$0xff]
    %v650 = vld [vmem:[#allocation2 + $0x3f8] sm:$0xff]
    %651 = vmatprep.subr.bf16.mxu0 %v524
    %652 = vmatpush1.bf16.msra.mxu0 %v523
    %653 = vmatprep.subr.bf16.mxu0 %v528
    %654 = vmatpush1.bf16.msra.mxu0 %v527
    %655 = vmatprep.subr.bf16.mxu0 %v532
    %656 = vmatpush1.bf16.msra.mxu0 %v531
    %657 = vmatprep.subr.bf16.mxu0 %v536
    %658 = vmatpush1.bf16.msra.mxu0 %v535
    %659 = vmatprep.subr.bf16.mxu0 %v540
    %660 = vmatpush1.bf16.msra.mxu0 %v539
    %661 = vmatprep.subr.bf16.mxu0 %v544
    %662 = vmatpush1.bf16.msra.mxu0 %v543
    %663 = vmatprep.subr.bf16.mxu0 %v548
    %664 = vmatpush1.bf16.msra.mxu0 %v547
    %665 = vmatprep.subr.bf16.mxu0 %v552
    %666 = vmatpush1.bf16.msra.mxu0 %v551
    %667 = vmatprep.subr.bf16.mxu0 %v556
    %668 = vmatpush1.bf16.msra.mxu0 %v555
    %669 = vmatprep.subr.bf16.mxu0 %v560
    %670 = vmatpush1.bf16.msra.mxu0 %v559
    %671 = vmatprep.subr.bf16.mxu0 %v564
    %672 = vmatpush1.bf16.msra.mxu0 %v563
    %673 = vmatprep.subr.bf16.mxu0 %v568
    %674 = vmatpush1.bf16.msra.mxu0 %v567
    %675 = vmatprep.subr.bf16.mxu0 %v572
    %676 = vmatpush1.bf16.msra.mxu0 %v571
    %677 = vmatprep.subr.bf16.mxu0 %v576
    %678 = vmatpush1.bf16.msra.mxu0 %v575
    %679 = vmatprep.subr.bf16.mxu0 %v580
    %680 = vmatpush1.bf16.msra.mxu0 %v579
    %681 = vmatprep.subr.bf16.mxu0 %v584
    %682 = vmatpush1.bf16.msra.mxu0 %v583
    %683 = vmatprep.mubr.bf16.mxu0 %v520
    %684 = vmatmul.mubr.bf16.gmra.mrb[0].mxu0 %v519
    %v685 = vpop.f32.mrb[0].mxu0
    %v686 = vadd.f32 0.0, %v685
    %v687 = vpop.f32.mrb[0].mxu0
    %v688 = vadd.f32 0.0, %v687
    %v689 = vpop.f32.mrb[0].mxu0
    %v690 = vpop.f32.mrb[0].mxu0
    %691 = vdwg.mxu0
    %692 = vmatprep.subr.bf16.mxu0 %v588
    %693 = vmatpush1.bf16.msra.mxu0 %v587
    %694 = vmatprep.subr.bf16.mxu0 %v592
    %695 = vmatpush1.bf16.msra.mxu0 %v591
    %696 = vmatprep.subr.bf16.mxu0 %v596
    %697 = vmatpush1.bf16.msra.mxu0 %v595
    %698 = vmatprep.subr.bf16.mxu0 %v600
    %699 = vmatpush1.bf16.msra.mxu0 %v599
    %700 = vmatprep.subr.bf16.mxu0 %v604
    %701 = vmatpush1.bf16.msra.mxu0 %v603
    %702 = vmatprep.subr.bf16.mxu0 %v608
    %703 = vmatpush1.bf16.msra.mxu0 %v607
    %704 = vmatprep.subr.bf16.mxu0 %v612
    %705 = vmatpush1.bf16.msra.mxu0 %v611
    %706 = vmatprep.subr.bf16.mxu0 %v616
    %707 = vmatpush1.bf16.msra.mxu0 %v615
    %708 = vmatprep.subr.bf16.mxu0 %v620
    %709 = vmatpush1.bf16.msra.mxu0 %v619
    %710 = vmatprep.subr.bf16.mxu0 %v624
    %711 = vmatpush1.bf16.msra.mxu0 %v623
    %712 = vmatprep.subr.bf16.mxu0 %v628
    %713 = vmatpush1.bf16.msra.mxu0 %v627
    %714 = vmatprep.subr.bf16.mxu0 %v632
    %715 = vmatpush1.bf16.msra.mxu0 %v631
    %716 = vmatprep.subr.bf16.mxu0 %v636
    %717 = vmatpush1.bf16.msra.mxu0 %v635
    %718 = vmatprep.subr.bf16.mxu0 %v640
    %719 = vmatpush1.bf16.msra.mxu0 %v639
    %720 = vmatprep.subr.bf16.mxu0 %v644
    %721 = vmatpush1.bf16.msra.mxu0 %v643
    %722 = vmatprep.subr.bf16.mxu0 %v648
    %723 = vmatpush1.bf16.msra.mxu0 %v647
    %724 = vmatprep.mubr.bf16.mxu0 %v522
    %725 = vmatmul.mubr.bf16.gmra.mrb[0].mxu0 %v521
    %v726 = vpop.f32.mrb[0].mxu0
    %v727 = vadd.f32 %v686, %v726
    %v728 = vpop.f32.mrb[0].mxu0
    %v729 = vadd.f32 %v688, %v728
    %v730 = vpop.f32.mrb[0].mxu0
    %v731 = vpop.f32.mrb[0].mxu0
    %732 = vdwg.mxu0
    %733 = vmatprep.subr.bf16.mxu0 %v526
    %734 = vmatpush1.bf16.msra.mxu0 %v525
    %735 = vmatprep.subr.bf16.mxu0 %v530
    %736 = vmatpush1.bf16.msra.mxu0 %v529
    %737 = vmatprep.subr.bf16.mxu0 %v534
    %738 = vmatpush1.bf16.msra.mxu0 %v533
    %739 = vmatprep.subr.bf16.mxu0 %v538
    %740 = vmatpush1.bf16.msra.mxu0 %v537
    %741 = vmatprep.subr.bf16.mxu0 %v542
    %742 = vmatpush1.bf16.msra.mxu0 %v541
    %743 = vmatprep.subr.bf16.mxu0 %v546
    %744 = vmatpush1.bf16.msra.mxu0 %v545
    %745 = vmatprep.subr.bf16.mxu0 %v550
    %746 = vmatpush1.bf16.msra.mxu0 %v549
    %747 = vmatprep.subr.bf16.mxu0 %v554
    %748 = vmatpush1.bf16.msra.mxu0 %v553
    %749 = vmatprep.subr.bf16.mxu0 %v558
    %750 = vmatpush1.bf16.msra.mxu0 %v557
    %751 = vmatprep.subr.bf16.mxu0 %v562
    %752 = vmatpush1.bf16.msra.mxu0 %v561
    %753 = vmatprep.subr.bf16.mxu0 %v566
    %754 = vmatpush1.bf16.msra.mxu0 %v565
    %755 = vmatprep.subr.bf16.mxu0 %v570
    %756 = vmatpush1.bf16.msra.mxu0 %v569
    %757 = vmatprep.subr.bf16.mxu0 %v574
    %758 = vmatpush1.bf16.msra.mxu0 %v573
    %759 = vmatprep.subr.bf16.mxu0 %v578
    %760 = vmatpush1.bf16.msra.mxu0 %v577
    %761 = vmatprep.subr.bf16.mxu0 %v582
    %762 = vmatpush1.bf16.msra.mxu0 %v581
    %763 = vmatprep.subr.bf16.mxu0 %v586
    %764 = vmatpush1.bf16.msra.mxu0 %v585
    %765 = vmatprep.mubr.bf16.mxu0 %v520
    %766 = vmatmul.mubr.bf16.gmra.mrb[0].mxu0 %v519
    %v767 = vpop.f32.mrb[0].mxu0
    %v768 = vadd.f32 0.0, %v767
    %v769 = vpop.f32.mrb[0].mxu0
    %v770 = vadd.f32 0.0, %v769
    %v771 = vpop.f32.mrb[0].mxu0
    %v772 = vpop.f32.mrb[0].mxu0
    %773 = vdwg.mxu0
    %774 = vmatprep.subr.bf16.mxu0 %v590
    %775 = vmatpush1.bf16.msra.mxu0 %v589
    %776 = vmatprep.subr.bf16.mxu0 %v594
    %777 = vmatpush1.bf16.msra.mxu0 %v593
    %778 = vmatprep.subr.bf16.mxu0 %v598
    %779 = vmatpush1.bf16.msra.mxu0 %v597
    %780 = vmatprep.subr.bf16.mxu0 %v602
    %781 = vmatpush1.bf16.msra.mxu0 %v601
    %782 = vmatprep.subr.bf16.mxu0 %v606
    %783 = vmatpush1.bf16.msra.mxu0 %v605
    %784 = vmatprep.subr.bf16.mxu0 %v610
    %785 = vmatpush1.bf16.msra.mxu0 %v609
    %786 = vmatprep.subr.bf16.mxu0 %v614
    %787 = vmatpush1.bf16.msra.mxu0 %v613
    %788 = vmatprep.subr.bf16.mxu0 %v618
    %789 = vmatpush1.bf16.msra.mxu0 %v617
    %790 = vmatprep.subr.bf16.mxu0 %v622
    %791 = vmatpush1.bf16.msra.mxu0 %v621
    %792 = vmatprep.subr.bf16.mxu0 %v626
    %793 = vmatpush1.bf16.msra.mxu0 %v625
    %794 = vmatprep.subr.bf16.mxu0 %v630
    %795 = vmatpush1.bf16.msra.mxu0 %v629
    %796 = vmatprep.subr.bf16.mxu0 %v634
    %797 = vmatpush1.bf16.msra.mxu0 %v633
    %798 = vmatprep.subr.bf16.mxu0 %v638
    %799 = vmatpush1.bf16.msra.mxu0 %v637
    %800 = vmatprep.subr.bf16.mxu0 %v642
    %801 = vmatpush1.bf16.msra.mxu0 %v641
    %802 = vmatprep.subr.bf16.mxu0 %v646
    %803 = vmatpush1.bf16.msra.mxu0 %v645
    %804 = vmatprep.subr.bf16.mxu0 %v650
    %805 = vmatpush1.bf16.msra.mxu0 %v649
    %806 = vmatprep.mubr.bf16.mxu0 %v522
    %807 = vmatmul.mubr.bf16.gmra.mrb[0].mxu0 %v521
    %v808 = vpop.f32.mrb[0].mxu0
    %v809 = vadd.f32 %v768, %v808
    %v810 = vpop.f32.mrb[0].mxu0
    %v811 = vadd.f32 %v770, %v810
    %v812 = vpop.f32.mrb[0].mxu0
    %v813 = vpop.f32.mrb[0].mxu0
    %814 = vdwg.mxu0
    %v815 = vrot.slane %v727, 4
    %v816 = vadd.f32 %v727, %v815
    %v817 = vrot.slane %v816, 2
    %v818 = vadd.f32 %v816, %v817
    %v819 = vrot.slane %v818, 1
    %v820 = vadd.f32 %v818, %v819
    %v821 = vrot.slane %v729, 4
    %v822 = vadd.f32 %v729, %v821
    %v823 = vrot.slane %v822, 2
    %v824 = vadd.f32 %v822, %v823
    %v825 = vrot.slane %v824, 1
    %v826 = vadd.f32 %v824, %v825
    %v827 = vrot.slane %v809, 4
    %v828 = vadd.f32 %v809, %v827
    %v829 = vrot.slane %v828, 2
    %v830 = vadd.f32 %v828, %v829
    %v831 = vrot.slane %v830, 1
    %v832 = vadd.f32 %v830, %v831
    %v833 = vrot.slane %v811, 4
    %v834 = vadd.f32 %v811, %v833
    %v835 = vrot.slane %v834, 2
    %v836 = vadd.f32 %v834, %v835
    %v837 = vrot.slane %v836, 1
    %v838 = vadd.f32 %v836, %v837
    %v839 = vmul.f32 %v820, 0.125
    %v840 = vmul.f32 %v826, 0.125
    %v841 = vmul.f32 %v832, 0.125
    %v842 = vmul.f32 %v838, 0.125
    %v843 = vsub.f32 %v727, %v839
    %v844 = vsub.f32 %v729, %v840
    %v845 = vsub.f32 %v809, %v841
    %v846 = vsub.f32 %v811, %v842
    %v847 = vmul.f32 %v843, %v843
    %v848 = vmul.f32 %v844, %v844
    %v849 = vmul.f32 %v845, %v845
    %v850 = vmul.f32 %v846, %v846
    %v851 = vrot.slane %v847, 4
    %v852 = vadd.f32 %v847, %v851
    %v853 = vrot.slane %v852, 2
    %v854 = vadd.f32 %v852, %v853
    %v855 = vrot.slane %v854, 1
    %v856 = vadd.f32 %v854, %v855
    %v857 = vrot.slane %v848, 4
    %v858 = vadd.f32 %v848, %v857
    %v859 = vrot.slane %v858, 2
    %v860 = vadd.f32 %v858, %v859
    %v861 = vrot.slane %v860, 1
    %v862 = vadd.f32 %v860, %v861
    %v863 = vrot.slane %v849, 4
    %v864 = vadd.f32 %v849, %v863
    %v865 = vrot.slane %v864, 2
    %v866 = vadd.f32 %v864, %v865
    %v867 = vrot.slane %v866, 1
    %v868 = vadd.f32 %v866, %v867
    %v869 = vrot.slane %v850, 4
    %v870 = vadd.f32 %v850, %v869
    %v871 = vrot.slane %v870, 2
    %v872 = vadd.f32 %v870, %v871
    %v873 = vrot.slane %v872, 1
    %v874 = vadd.f32 %v872, %v873
    %v875 = vmul.f32 %v856, 0.125
    %v876 = vmul.f32 %v862, 0.125
    %v877 = vmul.f32 %v868, 0.125
    %v878 = vmul.f32 %v874, 0.125
    %v879 = vadd.f32 %v875, 1e-05
    %v880 = vadd.f32 %v876, 1e-05
    %v881 = vadd.f32 %v877, 1e-05
    %v882 = vadd.f32 %v878, 1e-05
    %v883 = vrsqrt.pop %v879
    %v884 = vrsqrt.pop %v880
    %v885 = vrsqrt.pop %v881
    %v886 = vrsqrt.pop %v882
    %v887 = vmul.f32 %v843, %v883
    %v888 = vmul.f32 %v844, %v884
    %v889 = vmul.f32 %v845, %v885
    %v890 = vmul.f32 %v846, %v886
    %v891 = vld [vmem:[%s4] ss:$2 sm:$0xf]
    %v893 = vlaneseq
    %v894 = vshrl.u32 %v893, 7
    %v895 = vsub.s32 0, %v894
    %v896 = vrot.slane %v891, %v895
    %v897 = vlaneseq
    %v898 = vshrl.u32 %v897, 7
    %v899 = vsub.s32 1, %v898
    %v900 = vrot.slane %v891, %v899
    %v901 = vlaneseq
    %v902 = vshrl.u32 %v901, 7
    %v903 = vsub.s32 2, %v902
    %v904 = vrot.slane %v891, %v903
    %v905 = vlaneseq
    %v906 = vshrl.u32 %v905, 7
    %v907 = vsub.s32 3, %v906
    %v908 = vrot.slane %v891, %v907
    %v913 = vmul.f32 %v887, %v896
    %v914 = vmul.f32 %v888, %v900
    %v915 = vmul.f32 %v889, %v904
    %v916 = vmul.f32 %v890, %v908
    %s917 = scalar_lea.vmem %s4, 1
    %v918 = vld [vmem:[%s917] ss:$2 sm:$0xf]
    %v920 = vlaneseq
    %v921 = vshrl.u32 %v920, 7
    %v922 = vsub.s32 0, %v921
    %v923 = vrot.slane %v918, %v922
    %v924 = vlaneseq
    %v925 = vshrl.u32 %v924, 7
    %v926 = vsub.s32 1, %v925
    %v927 = vrot.slane %v918, %v926
    %v928 = vlaneseq
    %v929 = vshrl.u32 %v928, 7
    %v930 = vsub.s32 2, %v929
    %v931 = vrot.slane %v918, %v930
    %v932 = vlaneseq
    %v933 = vshrl.u32 %v932, 7
    %v934 = vsub.s32 3, %v933
    %v935 = vrot.slane %v918, %v934
    %v940 = vadd.f32 %v913, %v923
    %v941 = vadd.f32 %v914, %v927
    %v942 = vadd.f32 %v915, %v931
    %v943 = vadd.f32 %v916, %v935
    %v944 = vmax.f32 %v940, 0.0
    %v945 = vmax.f32 %v941, 0.0
    %v946 = vmax.f32 %v942, 0.0
    %v947 = vmax.f32 %v943, 0.0
    %s948 = smul.u32 %s515, 7
    %s949 = sshll.u32 %s948, 4
    %950 = dma.done %s72, %s949
    %v951 = vpack.c.bf16 %v944, %v944
    %v952 = vpack.c.bf16 %v945, %v945
    %v953 = vpack.c.bf16 %v946, %v946
    %v954 = vpack.c.bf16 %v947, %v947
    %v955 = vld [vmem:[#allocation3] sm:$0xff]
    %v956 = vld [vmem:[#allocation3 + $0x8] sm:$0xff]
    %v957 = vld [vmem:[#allocation3 + $0x10] sm:$0xff]
    %v958 = vld [vmem:[#allocation3 + $0x18] sm:$0xff]
    %v959 = vld [vmem:[#allocation3 + $0x20] sm:$0xff]
    %v960 = vld [vmem:[#allocation3 + $0x28] sm:$0xff]
    %v961 = vld [vmem:[#allocation3 + $0x30] sm:$0xff]
    %v962 = vld [vmem:[#allocation3 + $0x38] sm:$0xff]
    %v963 = vld [vmem:[#allocation3 + $0x40] sm:$0xff]
    %v964 = vld [vmem:[#allocation3 + $0x48] sm:$0xff]
    %v965 = vld [vmem:[#allocation3 + $0x50] sm:$0xff]
    %v966 = vld [vmem:[#allocation3 + $0x58] sm:$0xff]
    %v967 = vld [vmem:[#allocation3 + $0x60] sm:$0xff]
    %v968 = vld [vmem:[#allocation3 + $0x68] sm:$0xff]
    %v969 = vld [vmem:[#allocation3 + $0x70] sm:$0xff]
    %v970 = vld [vmem:[#allocation3 + $0x78] sm:$0xff]
    %v971 = vld [vmem:[#allocation3 + $0x80] sm:$0xff]
    %v972 = vld [vmem:[#allocation3 + $0x88] sm:$0xff]
    %v973 = vld [vmem:[#allocation3 + $0x90] sm:$0xff]
    %v974 = vld [vmem:[#allocation3 + $0x98] sm:$0xff]
    %v975 = vld [vmem:[#allocation3 + $0xa0] sm:$0xff]
    %v976 = vld [vmem:[#allocation3 + $0xa8] sm:$0xff]
    %v977 = vld [vmem:[#allocation3 + $0xb0] sm:$0xff]
    %v978 = vld [vmem:[#allocation3 + $0xb8] sm:$0xff]
    %v979 = vld [vmem:[#allocation3 + $0xc0] sm:$0xff]
    %v980 = vld [vmem:[#allocation3 + $0xc8] sm:$0xff]
    %v981 = vld [vmem:[#allocation3 + $0xd0] sm:$0xff]
    %v982 = vld [vmem:[#allocation3 + $0xd8] sm:$0xff]
    %v983 = vld [vmem:[#allocation3 + $0xe0] sm:$0xff]
    %v984 = vld [vmem:[#allocation3 + $0xe8] sm:$0xff]
    %v985 = vld [vmem:[#allocation3 + $0xf0] sm:$0xff]
    %v986 = vld [vmem:[#allocation3 + $0xf8] sm:$0xff]
    %v987 = vld [vmem:[#allocation3 + $0x100] sm:$0xff]
    %v988 = vld [vmem:[#allocation3 + $0x108] sm:$0xff]
    %v989 = vld [vmem:[#allocation3 + $0x110] sm:$0xff]
    %v990 = vld [vmem:[#allocation3 + $0x118] sm:$0xff]
    %v991 = vld [vmem:[#allocation3 + $0x120] sm:$0xff]
    %v992 = vld [vmem:[#allocation3 + $0x128] sm:$0xff]
    %v993 = vld [vmem:[#allocation3 + $0x130] sm:$0xff]
    %v994 = vld [vmem:[#allocation3 + $0x138] sm:$0xff]
    %v995 = vld [vmem:[#allocation3 + $0x140] sm:$0xff]
    %v996 = vld [vmem:[#allocation3 + $0x148] sm:$0xff]
    %v997 = vld [vmem:[#allocation3 + $0x150] sm:$0xff]
    %v998 = vld [vmem:[#allocation3 + $0x158] sm:$0xff]
    %v999 = vld [vmem:[#allocation3 + $0x160] sm:$0xff]
    %v1000 = vld [vmem:[#allocation3 + $0x168] sm:$0xff]
    %v1001 = vld [vmem:[#allocation3 + $0x170] sm:$0xff]
    %v1002 = vld [vmem:[#allocation3 + $0x178] sm:$0xff]
    %v1003 = vld [vmem:[#allocation3 + $0x180] sm:$0xff]
    %v1004 = vld [vmem:[#allocation3 + $0x188] sm:$0xff]
    %v1005 = vld [vmem:[#allocation3 + $0x190] sm:$0xff]
    %v1006 = vld [vmem:[#allocation3 + $0x198] sm:$0xff]
    %v1007 = vld [vmem:[#allocation3 + $0x1a0] sm:$0xff]
    %v1008 = vld [vmem:[#allocation3 + $0x1a8] sm:$0xff]
    %v1009 = vld [vmem:[#allocation3 + $0x1b0] sm:$0xff]
    %v1010 = vld [vmem:[#allocation3 + $0x1b8] sm:$0xff]
    %v1011 = vld [vmem:[#allocation3 + $0x1c0] sm:$0xff]
    %v1012 = vld [vmem:[#allocation3 + $0x1c8] sm:$0xff]
    %v1013 = vld [vmem:[#allocation3 + $0x1d0] sm:$0xff]
    %v1014 = vld [vmem:[#allocation3 + $0x1d8] sm:$0xff]
    %v1015 = vld [vmem:[#allocation3 + $0x1e0] sm:$0xff]
    %v1016 = vld [vmem:[#allocation3 + $0x1e8] sm:$0xff]
    %v1017 = vld [vmem:[#allocation3 + $0x1f0] sm:$0xff]
    %v1018 = vld [vmem:[#allocation3 + $0x1f8] sm:$0xff]
    %v1019 = vld [vmem:[#allocation3 + $0x200] sm:$0xff]
    %v1020 = vld [vmem:[#allocation3 + $0x208] sm:$0xff]
    %v1021 = vld [vmem:[#allocation3 + $0x210] sm:$0xff]
    %v1022 = vld [vmem:[#allocation3 + $0x218] sm:$0xff]
    %v1023 = vld [vmem:[#allocation3 + $0x220] sm:$0xff]
    %v1024 = vld [vmem:[#allocation3 + $0x228] sm:$0xff]
    %v1025 = vld [vmem:[#allocation3 + $0x230] sm:$0xff]
    %v1026 = vld [vmem:[#allocation3 + $0x238] sm:$0xff]
    %v1027 = vld [vmem:[#allocation3 + $0x240] sm:$0xff]
    %v1028 = vld [vmem:[#allocation3 + $0x248] sm:$0xff]
    %v1029 = vld [vmem:[#allocation3 + $0x250] sm:$0xff]
    %v1030 = vld [vmem:[#allocation3 + $0x258] sm:$0xff]
    %v1031 = vld [vmem:[#allocation3 + $0x260] sm:$0xff]
    %v1032 = vld [vmem:[#allocation3 + $0x268] sm:$0xff]
    %v1033 = vld [vmem:[#allocation3 + $0x270] sm:$0xff]
    %v1034 = vld [vmem:[#allocation3 + $0x278] sm:$0xff]
    %v1035 = vld [vmem:[#allocation3 + $0x280] sm:$0xff]
    %v1036 = vld [vmem:[#allocation3 + $0x288] sm:$0xff]
    %v1037 = vld [vmem:[#allocation3 + $0x290] sm:$0xff]
    %v1038 = vld [vmem:[#allocation3 + $0x298] sm:$0xff]
    %v1039 = vld [vmem:[#allocation3 + $0x2a0] sm:$0xff]
    %v1040 = vld [vmem:[#allocation3 + $0x2a8] sm:$0xff]
    %v1041 = vld [vmem:[#allocation3 + $0x2b0] sm:$0xff]
    %v1042 = vld [vmem:[#allocation3 + $0x2b8] sm:$0xff]
    %v1043 = vld [vmem:[#allocation3 + $0x2c0] sm:$0xff]
    %v1044 = vld [vmem:[#allocation3 + $0x2c8] sm:$0xff]
    %v1045 = vld [vmem:[#allocation3 + $0x2d0] sm:$0xff]
    %v1046 = vld [vmem:[#allocation3 + $0x2d8] sm:$0xff]
    %v1047 = vld [vmem:[#allocation3 + $0x2e0] sm:$0xff]
    %v1048 = vld [vmem:[#allocation3 + $0x2e8] sm:$0xff]
    %v1049 = vld [vmem:[#allocation3 + $0x2f0] sm:$0xff]
    %v1050 = vld [vmem:[#allocation3 + $0x2f8] sm:$0xff]
    %v1051 = vld [vmem:[#allocation3 + $0x300] sm:$0xff]
    %v1052 = vld [vmem:[#allocation3 + $0x308] sm:$0xff]
    %v1053 = vld [vmem:[#allocation3 + $0x310] sm:$0xff]
    %v1054 = vld [vmem:[#allocation3 + $0x318] sm:$0xff]
    %v1055 = vld [vmem:[#allocation3 + $0x320] sm:$0xff]
    %v1056 = vld [vmem:[#allocation3 + $0x328] sm:$0xff]
    %v1057 = vld [vmem:[#allocation3 + $0x330] sm:$0xff]
    %v1058 = vld [vmem:[#allocation3 + $0x338] sm:$0xff]
    %v1059 = vld [vmem:[#allocation3 + $0x340] sm:$0xff]
    %v1060 = vld [vmem:[#allocation3 + $0x348] sm:$0xff]
    %v1061 = vld [vmem:[#allocation3 + $0x350] sm:$0xff]
    %v1062 = vld [vmem:[#allocation3 + $0x358] sm:$0xff]
    %v1063 = vld [vmem:[#allocation3 + $0x360] sm:$0xff]
    %v1064 = vld [vmem:[#allocation3 + $0x368] sm:$0xff]
    %v1065 = vld [vmem:[#allocation3 + $0x370] sm:$0xff]
    %v1066 = vld [vmem:[#allocation3 + $0x378] sm:$0xff]
    %v1067 = vld [vmem:[#allocation3 + $0x380] sm:$0xff]
    %v1068 = vld [vmem:[#allocation3 + $0x388] sm:$0xff]
    %v1069 = vld [vmem:[#allocation3 + $0x390] sm:$0xff]
    %v1070 = vld [vmem:[#allocation3 + $0x398] sm:$0xff]
    %v1071 = vld [vmem:[#allocation3 + $0x3a0] sm:$0xff]
    %v1072 = vld [vmem:[#allocation3 + $0x3a8] sm:$0xff]
    %v1073 = vld [vmem:[#allocation3 + $0x3b0] sm:$0xff]
    %v1074 = vld [vmem:[#allocation3 + $0x3b8] sm:$0xff]
    %v1075 = vld [vmem:[#allocation3 + $0x3c0] sm:$0xff]
    %v1076 = vld [vmem:[#allocation3 + $0x3c8] sm:$0xff]
    %v1077 = vld [vmem:[#allocation3 + $0x3d0] sm:$0xff]
    %v1078 = vld [vmem:[#allocation3 + $0x3d8] sm:$0xff]
    %v1079 = vld [vmem:[#allocation3 + $0x3e0] sm:$0xff]
    %v1080 = vld [vmem:[#allocation3 + $0x3e8] sm:$0xff]
    %v1081 = vld [vmem:[#allocation3 + $0x3f0] sm:$0xff]
    %v1082 = vld [vmem:[#allocation3 + $0x3f8] sm:$0xff]
    %v1083 = vld [vmem:[#allocation3 + $0x400] sm:$0xff]
    %v1084 = vld [vmem:[#allocation3 + $0x408] sm:$0xff]
    %v1085 = vld [vmem:[#allocation3 + $0x410] sm:$0xff]
    %v1086 = vld [vmem:[#allocation3 + $0x418] sm:$0xff]
    %v1087 = vld [vmem:[#allocation3 + $0x420] sm:$0xff]
    %v1088 = vld [vmem:[#allocation3 + $0x428] sm:$0xff]
    %v1089 = vld [vmem:[#allocation3 + $0x430] sm:$0xff]
    %v1090 = vld [vmem:[#allocation3 + $0x438] sm:$0xff]
    %v1091 = vld [vmem:[#allocation3 + $0x440] sm:$0xff]
    %v1092 = vld [vmem:[#allocation3 + $0x448] sm:$0xff]
    %v1093 = vld [vmem:[#allocation3 + $0x450] sm:$0xff]
    %v1094 = vld [vmem:[#allocation3 + $0x458] sm:$0xff]
    %v1095 = vld [vmem:[#allocation3 + $0x460] sm:$0xff]
    %v1096 = vld [vmem:[#allocation3 + $0x468] sm:$0xff]
    %v1097 = vld [vmem:[#allocation3 + $0x470] sm:$0xff]
    %v1098 = vld [vmem:[#allocation3 + $0x478] sm:$0xff]
    %v1099 = vld [vmem:[#allocation3 + $0x480] sm:$0xff]
    %v1100 = vld [vmem:[#allocation3 + $0x488] sm:$0xff]
    %v1101 = vld [vmem:[#allocation3 + $0x490] sm:$0xff]
    %v1102 = vld [vmem:[#allocation3 + $0x498] sm:$0xff]
    %v1103 = vld [vmem:[#allocation3 + $0x4a0] sm:$0xff]
    %v1104 = vld [vmem:[#allocation3 + $0x4a8] sm:$0xff]
    %v1105 = vld [vmem:[#allocation3 + $0x4b0] sm:$0xff]
    %v1106 = vld [vmem:[#allocation3 + $0x4b8] sm:$0xff]
    %v1107 = vld [vmem:[#allocation3 + $0x4c0] sm:$0xff]
    %v1108 = vld [vmem:[#allocation3 + $0x4c8] sm:$0xff]
    %v1109 = vld [vmem:[#allocation3 + $0x4d0] sm:$0xff]
    %v1110 = vld [vmem:[#allocation3 + $0x4d8] sm:$0xff]
    %v1111 = vld [vmem:[#allocation3 + $0x4e0] sm:$0xff]
    %v1112 = vld [vmem:[#allocation3 + $0x4e8] sm:$0xff]
    %v1113 = vld [vmem:[#allocation3 + $0x4f0] sm:$0xff]
    %v1114 = vld [vmem:[#allocation3 + $0x4f8] sm:$0xff]
    %v1115 = vld [vmem:[#allocation3 + $0x500] sm:$0xff]
    %v1116 = vld [vmem:[#allocation3 + $0x508] sm:$0xff]
    %v1117 = vld [vmem:[#allocation3 + $0x510] sm:$0xff]
    %v1118 = vld [vmem:[#allocation3 + $0x518] sm:$0xff]
    %v1119 = vld [vmem:[#allocation3 + $0x520] sm:$0xff]
    %v1120 = vld [vmem:[#allocation3 + $0x528] sm:$0xff]
    %v1121 = vld [vmem:[#allocation3 + $0x530] sm:$0xff]
    %v1122 = vld [vmem:[#allocation3 + $0x538] sm:$0xff]
    %v1123 = vld [vmem:[#allocation3 + $0x540] sm:$0xff]
    %v1124 = vld [vmem:[#allocation3 + $0x548] sm:$0xff]
    %v1125 = vld [vmem:[#allocation3 + $0x550] sm:$0xff]
    %v1126 = vld [vmem:[#allocation3 + $0x558] sm:$0xff]
    %v1127 = vld [vmem:[#allocation3 + $0x560] sm:$0xff]
    %v1128 = vld [vmem:[#allocation3 + $0x568] sm:$0xff]
    %v1129 = vld [vmem:[#allocation3 + $0x570] sm:$0xff]
    %v1130 = vld [vmem:[#allocation3 + $0x578] sm:$0xff]
    %v1131 = vld [vmem:[#allocation3 + $0x580] sm:$0xff]
    %v1132 = vld [vmem:[#allocation3 + $0x588] sm:$0xff]
    %v1133 = vld [vmem:[#allocation3 + $0x590] sm:$0xff]
    %v1134 = vld [vmem:[#allocation3 + $0x598] sm:$0xff]
    %v1135 = vld [vmem:[#allocation3 + $0x5a0] sm:$0xff]
    %v1136 = vld [vmem:[#allocation3 + $0x5a8] sm:$0xff]
    %v1137 = vld [vmem:[#allocation3 + $0x5b0] sm:$0xff]
    %v1138 = vld [vmem:[#allocation3 + $0x5b8] sm:$0xff]
    %v1139 = vld [vmem:[#allocation3 + $0x5c0] sm:$0xff]
    %v1140 = vld [vmem:[#allocation3 + $0x5c8] sm:$0xff]
    %v1141 = vld [vmem:[#allocation3 + $0x5d0] sm:$0xff]
    %v1142 = vld [vmem:[#allocation3 + $0x5d8] sm:$0xff]
    %v1143 = vld [vmem:[#allocation3 + $0x5e0] sm:$0xff]
    %v1144 = vld [vmem:[#allocation3 + $0x5e8] sm:$0xff]
    %v1145 = vld [vmem:[#allocation3 + $0x5f0] sm:$0xff]
    %v1146 = vld [vmem:[#allocation3 + $0x5f8] sm:$0xff]
    %v1147 = vld [vmem:[#allocation3 + $0x600] sm:$0xff]
    %v1148 = vld [vmem:[#allocation3 + $0x608] sm:$0xff]
    %v1149 = vld [vmem:[#allocation3 + $0x610] sm:$0xff]
    %v1150 = vld [vmem:[#allocation3 + $0x618] sm:$0xff]
    %v1151 = vld [vmem:[#allocation3 + $0x620] sm:$0xff]
    %v1152 = vld [vmem:[#allocation3 + $0x628] sm:$0xff]
    %v1153 = vld [vmem:[#allocation3 + $0x630] sm:$0xff]
    %v1154 = vld [vmem:[#allocation3 + $0x638] sm:$0xff]
    %v1155 = vld [vmem:[#allocation3 + $0x640] sm:$0xff]
    %v1156 = vld [vmem:[#allocation3 + $0x648] sm:$0xff]
    %v1157 = vld [vmem:[#allocation3 + $0x650] sm:$0xff]
    %v1158 = vld [vmem:[#allocation3 + $0x658] sm:$0xff]
    %v1159 = vld [vmem:[#allocation3 + $0x660] sm:$0xff]
    %v1160 = vld [vmem:[#allocation3 + $0x668] sm:$0xff]
    %v1161 = vld [vmem:[#allocation3 + $0x670] sm:$0xff]
    %v1162 = vld [vmem:[#allocation3 + $0x678] sm:$0xff]
    %v1163 = vld [vmem:[#allocation3 + $0x680] sm:$0xff]
    %v1164 = vld [vmem:[#allocation3 + $0x688] sm:$0xff]
    %v1165 = vld [vmem:[#allocation3 + $0x690] sm:$0xff]
    %v1166 = vld [vmem:[#allocation3 + $0x698] sm:$0xff]
    %v1167 = vld [vmem:[#allocation3 + $0x6a0] sm:$0xff]
    %v1168 = vld [vmem:[#allocation3 + $0x6a8] sm:$0xff]
    %v1169 = vld [vmem:[#allocation3 + $0x6b0] sm:$0xff]
    %v1170 = vld [vmem:[#allocation3 + $0x6b8] sm:$0xff]
    %v1171 = vld [vmem:[#allocation3 + $0x6c0] sm:$0xff]
    %v1172 = vld [vmem:[#allocation3 + $0x6c8] sm:$0xff]
    %v1173 = vld [vmem:[#allocation3 + $0x6d0] sm:$0xff]
    %v1174 = vld [vmem:[#allocation3 + $0x6d8] sm:$0xff]
    %v1175 = vld [vmem:[#allocation3 + $0x6e0] sm:$0xff]
    %v1176 = vld [vmem:[#allocation3 + $0x6e8] sm:$0xff]
    %v1177 = vld [vmem:[#allocation3 + $0x6f0] sm:$0xff]
    %v1178 = vld [vmem:[#allocation3 + $0x6f8] sm:$0xff]
    %v1179 = vld [vmem:[%s6] sm:$0xff]
    %v1181 = vlaneseq
    %v1182 = vshrl.u32 %v1181, 7
    %v1183 = vsub.s32 0, %v1182
    %v1184 = vrot.slane %v1179, %v1183
    %v1185 = vlaneseq
    %v1186 = vshrl.u32 %v1185, 7
    %v1187 = vsub.s32 1, %v1186
    %v1188 = vrot.slane %v1179, %v1187
    %v1189 = vlaneseq
    %v1190 = vshrl.u32 %v1189, 7
    %v1191 = vsub.s32 2, %v1190
    %v1192 = vrot.slane %v1179, %v1191
    %v1193 = vlaneseq
    %v1194 = vshrl.u32 %v1193, 7
    %v1195 = vsub.s32 3, %v1194
    %v1196 = vrot.slane %v1179, %v1195
    %v1197 = vlaneseq
    %v1198 = vshrl.u32 %v1197, 7
    %v1199 = vsub.s32 4, %v1198
    %v1200 = vrot.slane %v1179, %v1199
    %v1201 = vlaneseq
    %v1202 = vshrl.u32 %v1201, 7
    %v1203 = vsub.s32 5, %v1202
    %v1204 = vrot.slane %v1179, %v1203
    %v1205 = vlaneseq
    %v1206 = vshrl.u32 %v1205, 7
    %v1207 = vsub.s32 6, %v1206
    %v1208 = vrot.slane %v1179, %v1207
    %1216 = vmatprep.subr.bf16.mxu0 %v956
    %1217 = vmatpush1.bf16.msra.mxu0 %v955
    %1218 = vmatprep.subr.bf16.mxu0 %v963
    %1219 = vmatpush1.bf16.msra.mxu0 %v962
    %1220 = vmatprep.subr.bf16.mxu0 %v970
    %1221 = vmatpush1.bf16.msra.mxu0 %v969
    %1222 = vmatprep.subr.bf16.mxu0 %v977
    %1223 = vmatpush1.bf16.msra.mxu0 %v976
    %1224 = vmatprep.subr.bf16.mxu0 %v984
    %1225 = vmatpush1.bf16.msra.mxu0 %v983
    %1226 = vmatprep.subr.bf16.mxu0 %v991
    %1227 = vmatpush1.bf16.msra.mxu0 %v990
    %1228 = vmatprep.subr.bf16.mxu0 %v998
    %1229 = vmatpush1.bf16.msra.mxu0 %v997
    %1230 = vmatprep.subr.bf16.mxu0 %v1005
    %1231 = vmatpush1.bf16.msra.mxu0 %v1004
    %1232 = vmatprep.subr.bf16.mxu0 %v1012
    %1233 = vmatpush1.bf16.msra.mxu0 %v1011
    %1234 = vmatprep.subr.bf16.mxu0 %v1019
    %1235 = vmatpush1.bf16.msra.mxu0 %v1018
    %1236 = vmatprep.subr.bf16.mxu0 %v1026
    %1237 = vmatpush1.bf16.msra.mxu0 %v1025
    %1238 = vmatprep.subr.bf16.mxu0 %v1033
    %1239 = vmatpush1.bf16.msra.mxu0 %v1032
    %1240 = vmatprep.subr.bf16.mxu0 %v1040
    %1241 = vmatpush1.bf16.msra.mxu0 %v1039
    %1242 = vmatprep.subr.bf16.mxu0 %v1047
    %1243 = vmatpush1.bf16.msra.mxu0 %v1046
    %1244 = vmatprep.subr.bf16.mxu0 %v1054
    %1245 = vmatpush1.bf16.msra.mxu0 %v1053
    %1246 = vmatprep.subr.bf16.mxu0 %v1061
    %1247 = vmatpush1.bf16.msra.mxu0 %v1060
    %1248 = vmatprep.mubr.bf16.mxu0 %v952
    %1249 = vmatmul.mubr.bf16.gmra.mrb[0].mxu0 %v951
    %v1250 = vpop.f32.mrb[0].mxu0
    %v1251 = vadd.f32 %v1184, %v1250
    %v1252 = vpop.f32.mrb[0].mxu0
    %v1253 = vadd.f32 %v1188, %v1252
    %v1254 = vpop.f32.mrb[0].mxu0
    %v1255 = vpop.f32.mrb[0].mxu0
    %1256 = vdwg.mxu0
    %1257 = vmatprep.subr.bf16.mxu0 %v1068
    %1258 = vmatpush1.bf16.msra.mxu0 %v1067
    %1259 = vmatprep.subr.bf16.mxu0 %v1075
    %1260 = vmatpush1.bf16.msra.mxu0 %v1074
    %1261 = vmatprep.subr.bf16.mxu0 %v1082
    %1262 = vmatpush1.bf16.msra.mxu0 %v1081
    %1263 = vmatprep.subr.bf16.mxu0 %v1089
    %1264 = vmatpush1.bf16.msra.mxu0 %v1088
    %1265 = vmatprep.subr.bf16.mxu0 %v1096
    %1266 = vmatpush1.bf16.msra.mxu0 %v1095
    %1267 = vmatprep.subr.bf16.mxu0 %v1103
    %1268 = vmatpush1.bf16.msra.mxu0 %v1102
    %1269 = vmatprep.subr.bf16.mxu0 %v1110
    %1270 = vmatpush1.bf16.msra.mxu0 %v1109
    %1271 = vmatprep.subr.bf16.mxu0 %v1117
    %1272 = vmatpush1.bf16.msra.mxu0 %v1116
    %1273 = vmatprep.subr.bf16.mxu0 %v1124
    %1274 = vmatpush1.bf16.msra.mxu0 %v1123
    %1275 = vmatprep.subr.bf16.mxu0 %v1131
    %1276 = vmatpush1.bf16.msra.mxu0 %v1130
    %1277 = vmatprep.subr.bf16.mxu0 %v1138
    %1278 = vmatpush1.bf16.msra.mxu0 %v1137
    %1279 = vmatprep.subr.bf16.mxu0 %v1145
    %1280 = vmatpush1.bf16.msra.mxu0 %v1144
    %1281 = vmatprep.subr.bf16.mxu0 %v1152
    %1282 = vmatpush1.bf16.msra.mxu0 %v1151
    %1283 = vmatprep.subr.bf16.mxu0 %v1159
    %1284 = vmatpush1.bf16.msra.mxu0 %v1158
    %1285 = vmatprep.subr.bf16.mxu0 %v1166
    %1286 = vmatpush1.bf16.msra.mxu0 %v1165
    %1287 = vmatprep.subr.bf16.mxu0 %v1173
    %1288 = vmatpush1.bf16.msra.mxu0 %v1172
    %1289 = vmatprep.mubr.bf16.mxu0 %v954
    %1290 = vmatmul.mubr.bf16.gmra.mrb[0].mxu0 %v953
    %v1291 = vpop.f32.mrb[0].mxu0
    %v1292 = vadd.f32 %v1251, %v1291
    %v1293 = vpop.f32.mrb[0].mxu0
    %v1294 = vadd.f32 %v1253, %v1293
    %v1295 = vpop.f32.mrb[0].mxu0
    %v1296 = vpop.f32.mrb[0].mxu0
    %1297 = vdwg.mxu0
    %1298 = vmatprep.subr.bf16.mxu0 %v958
    %1299 = vmatpush1.bf16.msra.mxu0 %v957
    %1300 = vmatprep.subr.bf16.mxu0 %v965
    %1301 = vmatpush1.bf16.msra.mxu0 %v964
    %1302 = vmatprep.subr.bf16.mxu0 %v972
    %1303 = vmatpush1.bf16.msra.mxu0 %v971
    %1304 = vmatprep.subr.bf16.mxu0 %v979
    %1305 = vmatpush1.bf16.msra.mxu0 %v978
    %1306 = vmatprep.subr.bf16.mxu0 %v986
    %1307 = vmatpush1.bf16.msra.mxu0 %v985
    %1308 = vmatprep.subr.bf16.mxu0 %v993
    %1309 = vmatpush1.bf16.msra.mxu0 %v992
    %1310 = vmatprep.subr.bf16.mxu0 %v1000
    %1311 = vmatpush1.bf16.msra.mxu0 %v999
    %1312 = vmatprep.subr.bf16.mxu0 %v1007
    %1313 = vmatpush1.bf16.msra.mxu0 %v1006
    %1314 = vmatprep.subr.bf16.mxu0 %v1014
    %1315 = vmatpush1.bf16.msra.mxu0 %v1013
    %1316 = vmatprep.subr.bf16.mxu0 %v1021
    %1317 = vmatpush1.bf16.msra.mxu0 %v1020
    %1318 = vmatprep.subr.bf16.mxu0 %v1028
    %1319 = vmatpush1.bf16.msra.mxu0 %v1027
    %1320 = vmatprep.subr.bf16.mxu0 %v1035
    %1321 = vmatpush1.bf16.msra.mxu0 %v1034
    %1322 = vmatprep.subr.bf16.mxu0 %v1042
    %1323 = vmatpush1.bf16.msra.mxu0 %v1041
    %1324 = vmatprep.subr.bf16.mxu0 %v1049
    %1325 = vmatpush1.bf16.msra.mxu0 %v1048
    %1326 = vmatprep.subr.bf16.mxu0 %v1056
    %1327 = vmatpush1.bf16.msra.mxu0 %v1055
    %1328 = vmatprep.subr.bf16.mxu0 %v1063
    %1329 = vmatpush1.bf16.msra.mxu0 %v1062
    %1330 = vmatprep.mubr.bf16.mxu0 %v952
    %1331 = vmatmul.mubr.bf16.gmra.mrb[0].mxu0 %v951
    %v1332 = vpop.f32.mrb[0].mxu0
    %v1333 = vadd.f32 %v1192, %v1332
    %v1334 = vpop.f32.mrb[0].mxu0
    %v1335 = vadd.f32 %v1196, %v1334
    %v1336 = vpop.f32.mrb[0].mxu0
    %v1337 = vpop.f32.mrb[0].mxu0
    %1338 = vdwg.mxu0
    %1339 = vmatprep.subr.bf16.mxu0 %v1070
    %1340 = vmatpush1.bf16.msra.mxu0 %v1069
    %1341 = vmatprep.subr.bf16.mxu0 %v1077
    %1342 = vmatpush1.bf16.msra.mxu0 %v1076
    %1343 = vmatprep.subr.bf16.mxu0 %v1084
    %1344 = vmatpush1.bf16.msra.mxu0 %v1083
    %1345 = vmatprep.subr.bf16.mxu0 %v1091
    %1346 = vmatpush1.bf16.msra.mxu0 %v1090
    %1347 = vmatprep.subr.bf16.mxu0 %v1098
    %1348 = vmatpush1.bf16.msra.mxu0 %v1097
    %1349 = vmatprep.subr.bf16.mxu0 %v1105
    %1350 = vmatpush1.bf16.msra.mxu0 %v1104
    %1351 = vmatprep.subr.bf16.mxu0 %v1112
    %1352 = vmatpush1.bf16.msra.mxu0 %v1111
    %1353 = vmatprep.subr.bf16.mxu0 %v1119
    %1354 = vmatpush1.bf16.msra.mxu0 %v1118
    %1355 = vmatprep.subr.bf16.mxu0 %v1126
    %1356 = vmatpush1.bf16.msra.mxu0 %v1125
    %1357 = vmatprep.subr.bf16.mxu0 %v1133
    %1358 = vmatpush1.bf16.msra.mxu0 %v1132
    %1359 = vmatprep.subr.bf16.mxu0 %v1140
    %1360 = vmatpush1.bf16.msra.mxu0 %v1139
    %1361 = vmatprep.subr.bf16.mxu0 %v1147
    %1362 = vmatpush1.bf16.msra.mxu0 %v1146
    %1363 = vmatprep.subr.bf16.mxu0 %v1154
    %1364 = vmatpush1.bf16.msra.mxu0 %v1153
    %1365 = vmatprep.subr.bf16.mxu0 %v1161
    %1366 = vmatpush1.bf16.msra.mxu0 %v1160
    %1367 = vmatprep.subr.bf16.mxu0 %v1168
    %1368 = vmatpush1.bf16.msra.mxu0 %v1167
    %1369 = vmatprep.subr.bf16.mxu0 %v1175
    %1370 = vmatpush1.bf16.msra.mxu0 %v1174
    %1371 = vmatprep.mubr.bf16.mxu0 %v954
    %1372 = vmatmul.mubr.bf16.gmra.mrb[0].mxu0 %v953
    %v1373 = vpop.f32.mrb[0].mxu0
    %v1374 = vadd.f32 %v1333, %v1373
    %v1375 = vpop.f32.mrb[0].mxu0
    %v1376 = vadd.f32 %v1335, %v1375
    %v1377 = vpop.f32.mrb[0].mxu0
    %v1378 = vpop.f32.mrb[0].mxu0
    %1379 = vdwg.mxu0
    %1380 = vmatprep.subr.bf16.mxu0 %v960
    %1381 = vmatpush1.bf16.msra.mxu0 %v959
    %1382 = vmatprep.subr.bf16.mxu0 %v967
    %1383 = vmatpush1.bf16.msra.mxu0 %v966
    %1384 = vmatprep.subr.bf16.mxu0 %v974
    %1385 = vmatpush1.bf16.msra.mxu0 %v973
    %1386 = vmatprep.subr.bf16.mxu0 %v981
    %1387 = vmatpush1.bf16.msra.mxu0 %v980
    %1388 = vmatprep.subr.bf16.mxu0 %v988
    %1389 = vmatpush1.bf16.msra.mxu0 %v987
    %1390 = vmatprep.subr.bf16.mxu0 %v995
    %1391 = vmatpush1.bf16.msra.mxu0 %v994
    %1392 = vmatprep.subr.bf16.mxu0 %v1002
    %1393 = vmatpush1.bf16.msra.mxu0 %v1001
    %1394 = vmatprep.subr.bf16.mxu0 %v1009
    %1395 = vmatpush1.bf16.msra.mxu0 %v1008
    %1396 = vmatprep.subr.bf16.mxu0 %v1016
    %1397 = vmatpush1.bf16.msra.mxu0 %v1015
    %1398 = vmatprep.subr.bf16.mxu0 %v1023
    %1399 = vmatpush1.bf16.msra.mxu0 %v1022
    %1400 = vmatprep.subr.bf16.mxu0 %v1030
    %1401 = vmatpush1.bf16.msra.mxu0 %v1029
    %1402 = vmatprep.subr.bf16.mxu0 %v1037
    %1403 = vmatpush1.bf16.msra.mxu0 %v1036
    %1404 = vmatprep.subr.bf16.mxu0 %v1044
    %1405 = vmatpush1.bf16.msra.mxu0 %v1043
    %1406 = vmatprep.subr.bf16.mxu0 %v1051
    %1407 = vmatpush1.bf16.msra.mxu0 %v1050
    %1408 = vmatprep.subr.bf16.mxu0 %v1058
    %1409 = vmatpush1.bf16.msra.mxu0 %v1057
    %1410 = vmatprep.subr.bf16.mxu0 %v1065
    %1411 = vmatpush1.bf16.msra.mxu0 %v1064
    %1412 = vmatprep.mubr.bf16.mxu0 %v952
    %1413 = vmatmul.mubr.bf16.gmra.mrb[0].mxu0 %v951
    %v1414 = vpop.f32.mrb[0].mxu0
    %v1415 = vadd.f32 %v1200, %v1414
    %v1416 = vpop.f32.mrb[0].mxu0
    %v1417 = vadd.f32 %v1204, %v1416
    %v1418 = vpop.f32.mrb[0].mxu0
    %v1419 = vpop.f32.mrb[0].mxu0
    %1420 = vdwg.mxu0
    %1421 = vmatprep.subr.bf16.mxu0 %v1072
    %1422 = vmatpush1.bf16.msra.mxu0 %v1071
    %1423 = vmatprep.subr.bf16.mxu0 %v1079
    %1424 = vmatpush1.bf16.msra.mxu0 %v1078
    %1425 = vmatprep.subr.bf16.mxu0 %v1086
    %1426 = vmatpush1.bf16.msra.mxu0 %v1085
    %1427 = vmatprep.subr.bf16.mxu0 %v1093
    %1428 = vmatpush1.bf16.msra.mxu0 %v1092
    %1429 = vmatprep.subr.bf16.mxu0 %v1100
    %1430 = vmatpush1.bf16.msra.mxu0 %v1099
    %1431 = vmatprep.subr.bf16.mxu0 %v1107
    %1432 = vmatpush1.bf16.msra.mxu0 %v1106
    %1433 = vmatprep.subr.bf16.mxu0 %v1114
    %1434 = vmatpush1.bf16.msra.mxu0 %v1113
    %1435 = vmatprep.subr.bf16.mxu0 %v1121
    %1436 = vmatpush1.bf16.msra.mxu0 %v1120
    %1437 = vmatprep.subr.bf16.mxu0 %v1128
    %1438 = vmatpush1.bf16.msra.mxu0 %v1127
    %1439 = vmatprep.subr.bf16.mxu0 %v1135
    %1440 = vmatpush1.bf16.msra.mxu0 %v1134
    %1441 = vmatprep.subr.bf16.mxu0 %v1142
    %1442 = vmatpush1.bf16.msra.mxu0 %v1141
    %1443 = vmatprep.subr.bf16.mxu0 %v1149
    %1444 = vmatpush1.bf16.msra.mxu0 %v1148
    %1445 = vmatprep.subr.bf16.mxu0 %v1156
    %1446 = vmatpush1.bf16.msra.mxu0 %v1155
    %1447 = vmatprep.subr.bf16.mxu0 %v1163
    %1448 = vmatpush1.bf16.msra.mxu0 %v1162
    %1449 = vmatprep.subr.bf16.mxu0 %v1170
    %1450 = vmatpush1.bf16.msra.mxu0 %v1169
    %1451 = vmatprep.subr.bf16.mxu0 %v1177
    %1452 = vmatpush1.bf16.msra.mxu0 %v1176
    %1453 = vmatprep.mubr.bf16.mxu0 %v954
    %1454 = vmatmul.mubr.bf16.gmra.mrb[0].mxu0 %v953
    %v1455 = vpop.f32.mrb[0].mxu0
    %v1456 = vadd.f32 %v1415, %v1455
    %v1457 = vpop.f32.mrb[0].mxu0
    %v1458 = vadd.f32 %v1417, %v1457
    %v1459 = vpop.f32.mrb[0].mxu0
    %v1460 = vpop.f32.mrb[0].mxu0
    %1461 = vdwg.mxu0
    %1462 = vmatprep.subr.bf16.mxu0 0
    %1463 = vmatpush1.bf16.msra.mxu0 %v961
    %1464 = vmatprep.subr.bf16.mxu0 0
    %1465 = vmatpush1.bf16.msra.mxu0 %v968
    %1466 = vmatprep.subr.bf16.mxu0 0
    %1467 = vmatpush1.bf16.msra.mxu0 %v975
    %1468 = vmatprep.subr.bf16.mxu0 0
    %1469 = vmatpush1.bf16.msra.mxu0 %v982
    %1470 = vmatprep.subr.bf16.mxu0 0
    %1471 = vmatpush1.bf16.msra.mxu0 %v989
    %1472 = vmatprep.subr.bf16.mxu0 0
    %1473 = vmatpush1.bf16.msra.mxu0 %v996
    %1474 = vmatprep.subr.bf16.mxu0 0
    %1475 = vmatpush1.bf16.msra.mxu0 %v1003
    %1476 = vmatprep.subr.bf16.mxu0 0
    %1477 = vmatpush1.bf16.msra.mxu0 %v1010
    %1478 = vmatprep.subr.bf16.mxu0 0
    %1479 = vmatpush1.bf16.msra.mxu0 %v1017
    %1480 = vmatprep.subr.bf16.mxu0 0
    %1481 = vmatpush1.bf16.msra.mxu0 %v1024
    %1482 = vmatprep.subr.bf16.mxu0 0
    %1483 = vmatpush1.bf16.msra.mxu0 %v1031
    %1484 = vmatprep.subr.bf16.mxu0 0
    %1485 = vmatpush1.bf16.msra.mxu0 %v1038
    %1486 = vmatprep.subr.bf16.mxu0 0
    %1487 = vmatpush1.bf16.msra.mxu0 %v1045
    %1488 = vmatprep.subr.bf16.mxu0 0
    %1489 = vmatpush1.bf16.msra.mxu0 %v1052
    %1490 = vmatprep.subr.bf16.mxu0 0
    %1491 = vmatpush1.bf16.msra.mxu0 %v1059
    %1492 = vmatprep.subr.bf16.mxu0 0
    %1493 = vmatpush1.bf16.msra.mxu0 %v1066
    %1494 = vmatprep.mubr.bf16.mxu0 %v952
    %1495 = vmatmul.mubr.bf16.gmra.mrb[0].mxu0 %v951
    %v1496 = vpop.f32.mrb[0].mxu0
    %v1497 = vadd.f32 %v1208, %v1496
    %v1498 = vpop.f32.mrb[0].mxu0
    %v1499 = vpop.f32.mrb[0].mxu0
    %v1500 = vpop.f32.mrb[0].mxu0
    %1501 = vdwg.mxu0
    %1502 = vmatprep.subr.bf16.mxu0 0
    %1503 = vmatpush1.bf16.msra.mxu0 %v1073
    %1504 = vmatprep.subr.bf16.mxu0 0
    %1505 = vmatpush1.bf16.msra.mxu0 %v1080
    %1506 = vmatprep.subr.bf16.mxu0 0
    %1507 = vmatpush1.bf16.msra.mxu0 %v1087
    %1508 = vmatprep.subr.bf16.mxu0 0
    %1509 = vmatpush1.bf16.msra.mxu0 %v1094
    %1510 = vmatprep.subr.bf16.mxu0 0
    %1511 = vmatpush1.bf16.msra.mxu0 %v1101
    %1512 = vmatprep.subr.bf16.mxu0 0
    %1513 = vmatpush1.bf16.msra.mxu0 %v1108
    %1514 = vmatprep.subr.bf16.mxu0 0
    %1515 = vmatpush1.bf16.msra.mxu0 %v1115
    %1516 = vmatprep.subr.bf16.mxu0 0
    %1517 = vmatpush1.bf16.msra.mxu0 %v1122
    %1518 = vmatprep.subr.bf16.mxu0 0
    %1519 = vmatpush1.bf16.msra.mxu0 %v1129
    %1520 = vmatprep.subr.bf16.mxu0 0
    %1521 = vmatpush1.bf16.msra.mxu0 %v1136
    %1522 = vmatprep.subr.bf16.mxu0 0
    %1523 = vmatpush1.bf16.msra.mxu0 %v1143
    %1524 = vmatprep.subr.bf16.mxu0 0
    %1525 = vmatpush1.bf16.msra.mxu0 %v1150
    %1526 = vmatprep.subr.bf16.mxu0 0
    %1527 = vmatpush1.bf16.msra.mxu0 %v1157
    %1528 = vmatprep.subr.bf16.mxu0 0
    %1529 = vmatpush1.bf16.msra.mxu0 %v1164
    %1530 = vmatprep.subr.bf16.mxu0 0
    %1531 = vmatpush1.bf16.msra.mxu0 %v1171
    %1532 = vmatprep.subr.bf16.mxu0 0
    %1533 = vmatpush1.bf16.msra.mxu0 %v1178
    %1534 = vmatprep.mubr.bf16.mxu0 %v954
    %1535 = vmatmul.mubr.bf16.gmra.mrb[0].mxu0 %v953
    %v1536 = vpop.f32.mrb[0].mxu0
    %v1537 = vadd.f32 %v1497, %v1536
    %v1538 = vpop.f32.mrb[0].mxu0
    %v1539 = vpop.f32.mrb[0].mxu0
    %v1540 = vpop.f32.mrb[0].mxu0
    %1541 = vdwg.mxu0
    %1542 = vst [vmem:[%s7] sm:$0xff] %v1292
    %1543 = vst [vmem:[%s7 + $0x8] sm:$0xff] %v1294
    %1544 = vst [vmem:[%s7 + $0x10] sm:$0xff] %v1374
    %1545 = vst [vmem:[%s7 + $0x18] sm:$0xff] %v1376
    %1546 = vst [vmem:[%s7 + $0x20] sm:$0xff] %v1456
    %1547 = vst [vmem:[%s7 + $0x28] sm:$0xff] %v1458
    %1548 = vst [vmem:[%s7 + $0x30] sm:$0xff] %v1537
    // Predicated region
    $region26: #{densenet_decoder_forward.1} parent=1 // pred_check
      _
    $region27: #{densenet_decoder_forward.1} parent=1 // pred_check_branch
      %1550 = sbr.rel (0) target = $region29
    $region28: #{densenet_decoder_forward.1} parent=1 // pred_region
      _
    $region29: #{densenet_decoder_forward.1} parent=1 // pred_fallthru
      _
    // Predicated region
    $region30: #{densenet_decoder_forward.1} parent=1 // pred_check
      _
    $region31: #{densenet_decoder_forward.1} parent=1 // pred_check_branch
      %1552 = sbr.rel (0) target = $region33
    $region32: #{densenet_decoder_forward.1} parent=1 // pred_region
      _
    $region33: #{densenet_decoder_forward.1} parent=1 // pred_fallthru
      _
    %1553 = vsyncpa [#allocation6], 1
  %1554 = vsyncmov [#allocation4]
  %s1555 = vpop.sfrf %1554
  %p1556 = scmp.eq.s32.totalorder %s1555, 0
  %p1557 = pneg %p1556
  %1559 = shalt.err (%p1557)
  %s1560 = scalar_lea.sflag [#allocation4], 1
  %1561 = vsyncmov %s1560
  %s1562 = vpop.sfrf %1561
  %p1563 = scmp.eq.s32.totalorder %s1562, 0
  %p1564 = pneg %p1563
  %1566 = shalt.err (%p1564)

</llo_original>
